<compile_context>
chip_gen: v5e
topology: v5e:2x2
jax: 0.10.0
libtpu: 0.0.40
codegen_flags: <defaults>
</compile_context>

<pallas_src>
import functools

import jax
import jax.numpy as jnp
from jax import lax
from jax.experimental import pallas as pl
from jax.experimental.pallas import tpu as pltpu

BN_EPS = 1e-5


def _round_up(x, m):
    return (x + m - 1) // m * m


def _pick_th(H, W):
    """Smallest divisor of H such that the M-tile (th*W) has >= 128 rows."""
    for th in range(1, H + 1):
        if H % th == 0 and th * W >= 128:
            return th
    return H


def _pick_tm(M, cap=2048):
    """Largest multiple-of-8 divisor of M that is <= cap (falls back to M)."""
    tm = M
    for cand in range(8, min(M, cap) + 1, 8):
        if M % cand == 0:
            tm = cand
    return tm


def conv_stats_kernel(x_ref, w_ref, y_ref, stats_ref, *, KH, KW, th, W):
    """Fused 3x3 conv tile (single im2col matmul) + one-pass BN statistics.

    x_ref:     [th+KH-1, W+KW-1, C]   one padded row-slab of one image
    w_ref:     [KH*KW*C, OCp]         lane-dense conv weight
    y_ref:     [th*W, OCp]            conv output tile (pre-BN)
    stats_ref: [1, 2, OCp]            per-image (sum, sum_sq), resident over t
    """
    t = pl.program_id(1)
    C = x_ref.shape[-1]
    Mt = th * W

    # im2col: one [Mt, KH*KW*C] patch, then a single MXU matmul
    # (K = KH*KW*C instead of 9 matmuls with K = C).
    cols = []
    for kh in range(KH):
        for kw in range(KW):
            cols.append(x_ref[kh:kh + th, kw:kw + W, :].reshape(Mt, C))
    patches = jnp.concatenate(cols, axis=-1)                  # [Mt, KH*KW*C]
    acc = jnp.dot(patches, w_ref[...],
                  preferred_element_type=jnp.float32)         # [Mt, OCp]

    # Lane-dense (OCp multiple of 128) output store -> unmasked vst.
    y_ref[...] = acc.astype(y_ref.dtype)

    # One-pass batch statistics: sum and sum-of-squares per channel.
    s = jnp.sum(acc, axis=0, keepdims=True)                   # [1, OCp]
    ss = jnp.sum(acc * acc, axis=0, keepdims=True)            # [1, OCp]
    upd = jnp.concatenate([s, ss], axis=0)[None]              # [1, 2, OCp]

    @pl.when(t == 0)
    def _():
        stats_ref[...] = jnp.zeros_like(stats_ref)

    stats_ref[...] += upd


def bn_apply_kernel(y_ref, scale_ref, shift_ref, o_ref):
    """Normalize: one fused multiply-add per element with pre-folded params."""
    o_ref[...] = y_ref[...] * scale_ref[...] + shift_ref[...]


@jax.jit
def basic_conv2d(x_nchw, w_oihw, bias, gamma, beta):
    """x_nchw: [N, C, H, W] -> [N, OC, H, W] (3x3 conv, stride 1, pad 1 + BN)."""
    del bias  # exactly cancelled by the train-mode batch mean
    N, C, H, W = x_nchw.shape
    OC, _, KH, KW = w_oihw.shape
    ph, pw = KH // 2, KW // 2
    Wp = W + 2 * pw
    OCp = _round_up(OC, 128)

    th = _pick_th(H, W)          # rows of H per grid step
    nt = H // th
    Mt = th * W                  # conv-output rows per grid step
    M = N * H * W

    # Layout glue: NCHW -> NHWC, spatial zero-pad, split H into row slabs
    # (each slab carries its own halo rows so grid blocks never overlap).
    # TODO(synk): an NHWC-native interface would avoid these extra HBM passes
    # (transpose / pad / transpose), which matter most on v5e.
    x_nhwc = jnp.transpose(x_nchw, (0, 2, 3, 1))
    x_pad = jnp.pad(x_nhwc, ((0, 0), (ph, ph), (pw, pw), (0, 0)))
    slabs = jnp.stack(
        [x_pad[:, t * th:t * th + th + KH - 1] for t in range(nt)], axis=1)
    # slabs: [N, nt, th+KH-1, Wp, C]

    # Weight OIHW -> HWIO -> [KH*KW*C, OCp] (lane-dense OC).
    w2d = jnp.transpose(w_oihw, (2, 3, 1, 0)).reshape(KH * KW * C, OC)
    w2d = jnp.pad(w2d, ((0, 0), (0, OCp - OC)))

    kern = functools.partial(conv_stats_kernel, KH=KH, KW=KW, th=th, W=W)
    y_flat, stats = pl.pallas_call(
        kern,
        grid=(N, nt),
        in_specs=[
            # one padded row-slab of one image per step (halo included)
            pl.BlockSpec((None, None, th + KH - 1, Wp, C),
                         lambda n, t: (n, t, 0, 0, 0)),
            # full (small) weight, resident
            pl.BlockSpec((KH * KW * C, OCp), lambda n, t: (0, 0)),
        ],
        out_specs=(
            # conv output tile, flat [M, OCp] row-major in (N, H, W)
            pl.BlockSpec((Mt, OCp), lambda n, t: (n * nt + t, 0)),
            # per-image (sum, sum_sq): resident across the t (reduction) axis
            pl.BlockSpec((1, 2, OCp), lambda n, t: (n, 0, 0)),
        ),
        out_shape=(
            jax.ShapeDtypeStruct((M, OCp), jnp.float32),
            jax.ShapeDtypeStruct((N, 2, OCp), jnp.float32),
        ),
        compiler_params=pltpu.CompilerParams(
            dimension_semantics=("parallel", "arbitrary")),
    )(slabs, w2d)

    # Finalize BN statistics on tiny [OCp] vectors and pre-fold scale/shift.
    tot = jnp.sum(stats, axis=0)                       # [2, OCp]
    mean = tot[0] / M
    var = jnp.maximum(tot[1] / M - mean * mean, 0.0)   # biased (training) var
    inv = lax.rsqrt(var + BN_EPS)
    gamma_p = jnp.pad(gamma, (0, OCp - OC))
    beta_p = jnp.pad(beta, (0, OCp - OC))
    scale = (gamma_p * inv).reshape(1, OCp)
    shift = (beta_p - mean * gamma_p * inv).reshape(1, OCp)

    tm = _pick_tm(M)
    out_flat = pl.pallas_call(
        bn_apply_kernel,
        grid=(M // tm,),
        in_specs=[
            pl.BlockSpec((tm, OCp), lambda i: (i, 0)),
            pl.BlockSpec((1, OCp), lambda i: (0, 0)),
            pl.BlockSpec((1, OCp), lambda i: (0, 0)),
        ],
        out_specs=pl.BlockSpec((tm, OCp), lambda i: (i, 0)),
        out_shape=jax.ShapeDtypeStruct((M, OCp), jnp.float32),
        compiler_params=pltpu.CompilerParams(
            dimension_semantics=("parallel",)),
    )(y_flat, scale, shift)

    out_nhwc = out_flat[:, :OC].reshape(N, H, W, OC)
    return jnp.transpose(out_nhwc, (0, 3, 1, 2))


def reference(x_nchw, w_oihw, bias, gamma, beta):
    """Pure-JAX reference: lax conv + bias + train-mode BN (matches PyTorch)."""
    y = lax.conv_general_dilated(
        x_nchw, w_oihw, window_strides=(1, 1),
        padding=((1, 1), (1, 1)),
        dimension_numbers=("NCHW", "OIHW", "NCHW"))
    y = y + bias.reshape(1, -1, 1, 1)
    mean = jnp.mean(y, axis=(0, 2, 3), keepdims=True)
    var = jnp.mean((y - mean) ** 2, axis=(0, 2, 3), keepdims=True)
    return (y - mean) * lax.rsqrt(var + BN_EPS) * gamma.reshape(1, -1, 1, 1) \
        + beta.reshape(1, -1, 1, 1)


if __name__ == "__main__":
    # Small deterministic config: in_channels=4, out_channels=8,
    # kernel_size=3, stride=1, padding=1; batch=2, spatial=16x16.
    N, C, H, W = 2, 4, 16, 16
    OC, KH, KW = 8, 3, 3

    key = jax.random.PRNGKey(0)
    kx, kw, kb = jax.random.split(key, 3)
    x = jax.random.normal(kx, (N, C, H, W), dtype=jnp.float32)
    w = jax.random.normal(kw, (OC, C, KH, KW), dtype=jnp.float32) * 0.1
    b = jax.random.normal(kb, (OC,), dtype=jnp.float32) * 0.1
    gamma = jnp.ones((OC,), dtype=jnp.float32)   # BN weight default init
    beta = jnp.zeros((OC,), dtype=jnp.float32)   # BN bias default init

    out = basic_conv2d(x, w, b, gamma, beta)
    out = jax.block_until_ready(out)

    ref = reference(x, w, b, gamma, beta)
    assert out.shape == (N, OC, H, W)
    assert jnp.allclose(out, ref, atol=1e-4, rtol=1e-4), \
        f"max abs err = {jnp.max(jnp.abs(out - ref))}"

    print("KERNEL_OK")
</pallas_src>

<mosaic_0001>
module attributes {stable_mosaic.version = 11 : i64} {
  func.func @bn_apply_kernel(%arg0: i32, %arg1: memref<512x128xf32, #tpu.memory_space<vmem>>, %arg2: memref<1x128xf32, #tpu.memory_space<vmem>>, %arg3: memref<1x128xf32, #tpu.memory_space<vmem>>, %arg4: memref<512x128xf32, #tpu.memory_space<vmem>>) attributes {dimension_semantics = [#tpu.dimension_semantics<parallel>], iteration_bounds = array<i64: 1>, scalar_prefetch = 0 : i64, scratch_operands = 0 : i64, tpu.core_type = #tpu.core_type<tc>, window_params = [{transform_indices = @transform_0, window_bounds = array<i64: 512, 128>}, {pipeline_mode = #tpu.pipeline_mode<synchronous>, transform_indices = @transform_1, window_bounds = array<i64: 1, 128>}, {pipeline_mode = #tpu.pipeline_mode<synchronous>, transform_indices = @transform_2, window_bounds = array<i64: 1, 128>}, {transform_indices = @transform_3, window_bounds = array<i64: 512, 128>}]} {
    %c0 = arith.constant 0 : index
    %c0_0 = arith.constant 0 : index
    %0 = vector.load %arg1[%c0, %c0_0] : memref<512x128xf32, #tpu.memory_space<vmem>>, vector<512x128xf32>
    %c0_1 = arith.constant 0 : index
    %c0_2 = arith.constant 0 : index
    %1 = vector.load %arg2[%c0_1, %c0_2] : memref<1x128xf32, #tpu.memory_space<vmem>>, vector<1x128xf32>
    %2 = vector.broadcast %1 : vector<1x128xf32> to vector<512x128xf32>
    %3 = arith.mulf %0, %2 : vector<512x128xf32>
    %c0_3 = arith.constant 0 : index
    %c0_4 = arith.constant 0 : index
    %4 = vector.load %arg3[%c0_3, %c0_4] : memref<1x128xf32, #tpu.memory_space<vmem>>, vector<1x128xf32>
    %5 = vector.broadcast %4 : vector<1x128xf32> to vector<512x128xf32>
    %6 = arith.addf %3, %5 : vector<512x128xf32>
    %c0_5 = arith.constant 0 : index
    %c0_6 = arith.constant 0 : index
    %7 = vector.load %arg4[%c0_5, %c0_6] : memref<512x128xf32, #tpu.memory_space<vmem>>, vector<512x128xf32>
    tpu.vector_store %arg4[%c0_5, %c0_6], %6 {strides = array<i32>} : memref<512x128xf32, #tpu.memory_space<vmem>>, vector<512x128xf32>,
    return
  }
  func.func @transform_0(%arg0: i32) -> (i32, i32) {
    %c0_i32 = arith.constant 0 : i32
    %c0_i32_0 = arith.constant 0 : i32
    return %arg0, %c0_i32 : i32, i32
  }
  func.func @transform_1(%arg0: i32) -> (i32, i32) {
    %c0_i32 = arith.constant 0 : i32
    %c0_i32_0 = arith.constant 0 : i32
    %c0_i32_1 = arith.constant 0 : i32
    return %c0_i32, %c0_i32_0 : i32, i32
  }
  func.func @transform_2(%arg0: i32) -> (i32, i32) {
    %c0_i32 = arith.constant 0 : i32
    %c0_i32_0 = arith.constant 0 : i32
    %c0_i32_1 = arith.constant 0 : i32
    return %c0_i32, %c0_i32_0 : i32, i32
  }
  func.func @transform_3(%arg0: i32) -> (i32, i32) {
    %c0_i32 = arith.constant 0 : i32
    %c0_i32_0 = arith.constant 0 : i32
    return %arg0, %c0_i32 : i32, i32
  }
}

module attributes {stable_mosaic.version = 11 : i64} {
  func.func @conv_stats_kernel(%arg0: i32, %arg1: i32, %arg2: memref<1x1x10x18x4xf32, #tpu.memory_space<vmem>>, %arg3: memref<36x128xf32, #tpu.memory_space<vmem>>, %arg4: memref<128x128xf32, #tpu.memory_space<vmem>>, %arg5: memref<1x2x128xf32, #tpu.memory_space<vmem>>) attributes {dimension_semantics = [#tpu.dimension_semantics<parallel>, #tpu.dimension_semantics<arbitrary>], iteration_bounds = array<i64: 2, 2>, scalar_prefetch = 0 : i64, scratch_operands = 0 : i64, tpu.core_type = #tpu.core_type<tc>, window_params = [{transform_indices = @transform_0, window_bounds = array<i64: 1, 1, 10, 18, 4>}, {pipeline_mode = #tpu.pipeline_mode<synchronous>, transform_indices = @transform_1, window_bounds = array<i64: 36, 128>}, {transform_indices = @transform_2, window_bounds = array<i64: 128, 128>}, {transform_indices = @transform_3, window_bounds = array<i64: 1, 2, 128>}]} {
    %c0 = arith.constant 0 : index
    %c0_0 = arith.constant 0 : index
    %c0_1 = arith.constant 0 : index
    %c0_2 = arith.constant 0 : index
    %c0_3 = arith.constant 0 : index
    %0 = vector.load %arg2[%c0, %c0_0, %c0_1, %c0_2, %c0_3] : memref<1x1x10x18x4xf32, #tpu.memory_space<vmem>>, vector<1x1x8x16x4xf32>
    %1 = vector.shape_cast %0 : vector<1x1x8x16x4xf32> to vector<8x16x4xf32>
    %2 = vector.shape_cast %1 : vector<8x16x4xf32> to vector<128x4xf32>
    %c0_4 = arith.constant 0 : index
    %c0_5 = arith.constant 0 : index
    %c0_6 = arith.constant 0 : index
    %c1 = arith.constant 1 : index
    %c0_7 = arith.constant 0 : index
    %3 = vector.load %arg2[%c0_4, %c0_5, %c0_6, %c1, %c0_7] : memref<1x1x10x18x4xf32, #tpu.memory_space<vmem>>, vector<1x1x8x16x4xf32>
    %4 = vector.shape_cast %3 : vector<1x1x8x16x4xf32> to vector<8x16x4xf32>
    %5 = vector.shape_cast %4 : vector<8x16x4xf32> to vector<128x4xf32>
    %c0_8 = arith.constant 0 : index
    %c0_9 = arith.constant 0 : index
    %c0_10 = arith.constant 0 : index
    %c2 = arith.constant 2 : index
    %c0_11 = arith.constant 0 : index
    %6 = vector.load %arg2[%c0_8, %c0_9, %c0_10, %c2, %c0_11] : memref<1x1x10x18x4xf32, #tpu.memory_space<vmem>>, vector<1x1x8x16x4xf32>
    %7 = vector.shape_cast %6 : vector<1x1x8x16x4xf32> to vector<8x16x4xf32>
    %8 = vector.shape_cast %7 : vector<8x16x4xf32> to vector<128x4xf32>
    %c0_12 = arith.constant 0 : index
    %c0_13 = arith.constant 0 : index
    %c1_14 = arith.constant 1 : index
    %c0_15 = arith.constant 0 : index
    %c0_16 = arith.constant 0 : index
    %9 = vector.load %arg2[%c0_12, %c0_13, %c1_14, %c0_15, %c0_16] : memref<1x1x10x18x4xf32, #tpu.memory_space<vmem>>, vector<1x1x8x16x4xf32>
    %10 = vector.shape_cast %9 : vector<1x1x8x16x4xf32> to vector<8x16x4xf32>
    %11 = vector.shape_cast %10 : vector<8x16x4xf32> to vector<128x4xf32>
    %c0_17 = arith.constant 0 : index
    %c0_18 = arith.constant 0 : index
    %c1_19 = arith.constant 1 : index
    %c1_20 = arith.constant 1 : index
    %c0_21 = arith.constant 0 : index
    %12 = vector.load %arg2[%c0_17, %c0_18, %c1_19, %c1_20, %c0_21] : memref<1x1x10x18x4xf32, #tpu.memory_space<vmem>>, vector<1x1x8x16x4xf32>
    %13 = vector.shape_cast %12 : vector<1x1x8x16x4xf32> to vector<8x16x4xf32>
    %14 = vector.shape_cast %13 : vector<8x16x4xf32> to vector<128x4xf32>
    %c0_22 = arith.constant 0 : index
    %c0_23 = arith.constant 0 : index
    %c1_24 = arith.constant 1 : index
    %c2_25 = arith.constant 2 : index
    %c0_26 = arith.constant 0 : index
    %15 = vector.load %arg2[%c0_22, %c0_23, %c1_24, %c2_25, %c0_26] : memref<1x1x10x18x4xf32, #tpu.memory_space<vmem>>, vector<1x1x8x16x4xf32>
    %16 = vector.shape_cast %15 : vector<1x1x8x16x4xf32> to vector<8x16x4xf32>
    %17 = vector.shape_cast %16 : vector<8x16x4xf32> to vector<128x4xf32>
    %c0_27 = arith.constant 0 : index
    %c0_28 = arith.constant 0 : index
    %c2_29 = arith.constant 2 : index
    %c0_30 = arith.constant 0 : index
    %c0_31 = arith.constant 0 : index
    %18 = vector.load %arg2[%c0_27, %c0_28, %c2_29, %c0_30, %c0_31] : memref<1x1x10x18x4xf32, #tpu.memory_space<vmem>>, vector<1x1x8x16x4xf32>
    %19 = vector.shape_cast %18 : vector<1x1x8x16x4xf32> to vector<8x16x4xf32>
    %20 = vector.shape_cast %19 : vector<8x16x4xf32> to vector<128x4xf32>
    %c0_32 = arith.constant 0 : index
    %c0_33 = arith.constant 0 : index
    %c2_34 = arith.constant 2 : index
    %c1_35 = arith.constant 1 : index
    %c0_36 = arith.constant 0 : index
    %21 = vector.load %arg2[%c0_32, %c0_33, %c2_34, %c1_35, %c0_36] : memref<1x1x10x18x4xf32, #tpu.memory_space<vmem>>, vector<1x1x8x16x4xf32>
    %22 = vector.shape_cast %21 : vector<1x1x8x16x4xf32> to vector<8x16x4xf32>
    %23 = vector.shape_cast %22 : vector<8x16x4xf32> to vector<128x4xf32>
    %c0_37 = arith.constant 0 : index
    %c0_38 = arith.constant 0 : index
    %c2_39 = arith.constant 2 : index
    %c2_40 = arith.constant 2 : index
    %c0_41 = arith.constant 0 : index
    %24 = vector.load %arg2[%c0_37, %c0_38, %c2_39, %c2_40, %c0_41] : memref<1x1x10x18x4xf32, #tpu.memory_space<vmem>>, vector<1x1x8x16x4xf32>
    %25 = vector.shape_cast %24 : vector<1x1x8x16x4xf32> to vector<8x16x4xf32>
    %26 = vector.shape_cast %25 : vector<8x16x4xf32> to vector<128x4xf32>
    %27 = tpu.concatenate %2, %5, %8, %11, %14, %17, %20, %23, %26 in 1 : vector<128x4xf32>, vector<128x4xf32>, vector<128x4xf32>, vector<128x4xf32>, vector<128x4xf32>, vector<128x4xf32>, vector<128x4xf32>, vector<128x4xf32>, vector<128x4xf32> -> vector<128x36xf32>
    %c0_42 = arith.constant 0 : index
    %c0_43 = arith.constant 0 : index
    %28 = vector.load %arg3[%c0_42, %c0_43] : memref<36x128xf32, #tpu.memory_space<vmem>>, vector<36x128xf32>
    %cst = arith.constant dense<0.000000e+00> : vector<128x128xf32>
    %29 = tpu.matmul %27, %28, %cst {dimension_numbers = #tpu.dot_dimension_numbers<[1], [0], [0], [1], [0, 0, 1, 1], [], []>} : vector<128x36xf32>, vector<36x128xf32>, vector<128x128xf32> -> vector<128x128xf32>
    %c0_44 = arith.constant 0 : index
    %c0_45 = arith.constant 0 : index
    %30 = vector.load %arg4[%c0_44, %c0_45] : memref<128x128xf32, #tpu.memory_space<vmem>>, vector<128x128xf32>
    tpu.vector_store %arg4[%c0_44, %c0_45], %29 {strides = array<i32>} : memref<128x128xf32, #tpu.memory_space<vmem>>, vector<128x128xf32>,
    %cst_46 = arith.constant dense<0.000000e+00> : vector<128xf32>
    %31 = vector.multi_reduction <add>, %29, %cst_46 [0] : vector<128x128xf32> to vector<128xf32>
    %32 = vector.shape_cast %31 : vector<128xf32> to vector<1x128xf32>
    %33 = arith.mulf %29, %29 : vector<128x128xf32>
    %cst_47 = arith.constant dense<0.000000e+00> : vector<128xf32>
    %34 = vector.multi_reduction <add>, %33, %cst_47 [0] : vector<128x128xf32> to vector<128xf32>
    %35 = vector.shape_cast %34 : vector<128xf32> to vector<1x128xf32>
    %36 = tpu.concatenate %32, %35 in 0 : vector<1x128xf32>, vector<1x128xf32> -> vector<2x128xf32>
    %37 = vector.shape_cast %36 : vector<2x128xf32> to vector<1x2x128xf32>
    %c0_i32 = arith.constant 0 : i32
    %38 = arith.cmpi eq, %arg1, %c0_i32 : i32
    %39 = arith.extui %38 : i1 to i32
    %c0_i32_48 = arith.constant 0 : i32
    %40 = arith.cmpi ne, %39, %c0_i32_48 : i32
    scf.if %40 {
      %cst_55 = arith.constant 0.000000e+00 : f32
      %44 = vector.broadcast %cst_55 : f32 to vector<1x2x128xf32>
      %c0_56 = arith.constant 0 : index
      %c0_57 = arith.constant 0 : index
      %c0_58 = arith.constant 0 : index
      %45 = vector.load %arg5[%c0_56, %c0_57, %c0_58] : memref<1x2x128xf32, #tpu.memory_space<vmem>>, vector<1x2x128xf32>
      tpu.vector_store %arg5[%c0_56, %c0_57, %c0_58], %44 {strides = array<i32>} : memref<1x2x128xf32, #tpu.memory_space<vmem>>, vector<1x2x128xf32>,
    } else {
    }
    %c0_49 = arith.constant 0 : index
    %c0_50 = arith.constant 0 : index
    %c0_51 = arith.constant 0 : index
    %41 = vector.load %arg5[%c0_49, %c0_50, %c0_51] : memref<1x2x128xf32, #tpu.memory_space<vmem>>, vector<1x2x128xf32>
    %42 = arith.addf %41, %37 : vector<1x2x128xf32>
    %c0_52 = arith.constant 0 : index
    %c0_53 = arith.constant 0 : index
    %c0_54 = arith.constant 0 : index
    %43 = vector.load %arg5[%c0_52, %c0_53, %c0_54] : memref<1x2x128xf32, #tpu.memory_space<vmem>>, vector<1x2x128xf32>
    tpu.vector_store %arg5[%c0_52, %c0_53, %c0_54], %42 {strides = array<i32>} : memref<1x2x128xf32, #tpu.memory_space<vmem>>, vector<1x2x128xf32>,
    return
  }
  func.func @transform_0(%arg0: i32, %arg1: i32) -> (i32, i32, i32, i32, i32) {
    %c0_i32 = arith.constant 0 : i32
    %c0_i32_0 = arith.constant 0 : i32
    %c0_i32_1 = arith.constant 0 : i32
    %c0_i32_2 = arith.constant 0 : i32
    return %arg0, %arg1, %c0_i32, %c0_i32_0, %c0_i32_1 : i32, i32, i32, i32, i32
  }
  func.func @transform_1(%arg0: i32, %arg1: i32) -> (i32, i32) {
    %c0_i32 = arith.constant 0 : i32
    %c0_i32_0 = arith.constant 0 : i32
    %c0_i32_1 = arith.constant 0 : i32
    return %c0_i32, %c0_i32_0 : i32, i32
  }
  func.func @transform_2(%arg0: i32, %arg1: i32) -> (i32, i32) {
    %c2_i32 = arith.constant 2 : i32
    %0 = arith.muli %arg0, %c2_i32 : i32
    %1 = arith.addi %0, %arg1 : i32
    %c0_i32 = arith.constant 0 : i32
    %c0_i32_0 = arith.constant 0 : i32
    return %1, %c0_i32 : i32, i32
  }
  func.func @transform_3(%arg0: i32, %arg1: i32) -> (i32, i32, i32) {
    %c0_i32 = arith.constant 0 : i32
    %c0_i32_0 = arith.constant 0 : i32
    %c0_i32_1 = arith.constant 0 : i32
    return %arg0, %c0_i32, %c0_i32_0 : i32, i32, i32
  }
}

</mosaic_0001>

<llo_original>
// kernel: basic_conv2d.3
$region0: #{basic_conv2d.3}
  #allocation0 [shape = 'u32[]', space=smem, size = 0x4, offset = 0x4, fixed_abs, tag = 'smem constant byte address 0x4 - core index']
  #allocation1 [shape = 'u32[72,128]{1,0:T(1,128)}', space=vmem, size = 0x9000, scoped, tag = 'internal scratch']
  %s0 = inlined_call_operand.vmem [shape: f32[512,128], index: 0, kind: input, shape index: {}]
  %s1 = inlined_call_operand.vmem [shape: f32[1,128], index: 1, kind: input, shape index: {}]
  %s2 = inlined_call_operand.vmem [shape: f32[1,128], index: 2, kind: input, shape index: {}]
  %s3 = inlined_call_operand.vmem [shape: f32[512,128], index: 3, kind: output, shape index: {}]
  %s4 = sld [smem:[#allocation0]]
  $region22: #{basic_conv2d.3} parent=0
    _
  %s6 = ssub.s32 1, %s4
  %s7 = scalar_select 0, %s6, %s4
  // Predicated region
  $region2: #{basic_conv2d.3} parent=0 // pred_check
    _
  $region3: #{basic_conv2d.3} parent=0 // pred_check_branch
    %9 = sbr.rel (0) target = $region5
  $region4: #{basic_conv2d.3} parent=0 // pred_region
    _
  $region5: #{basic_conv2d.3} parent=0 // pred_fallthru
    _
  // Predicated region
  $region6: #{basic_conv2d.3} parent=0 // pred_check
    _
  $region7: #{basic_conv2d.3} parent=0 // pred_check_branch
    %11 = sbr.rel (0) target = $region9
  $region8: #{basic_conv2d.3} parent=0 // pred_region
    _
  $region9: #{basic_conv2d.3} parent=0 // pred_fallthru
    _
  // Predicated region
  $region10: #{basic_conv2d.3} parent=0 // pred_check
    _
  $region11: #{basic_conv2d.3} parent=0 // pred_check_branch
    %13 = sbr.rel (0) target = $region13
  $region12: #{basic_conv2d.3} parent=0 // pred_region
    _
  $region13: #{basic_conv2d.3} parent=0 // pred_fallthru
    _
  %v14 = vld [vmem:[%s0] sm:$0xff]
  %v15 = vld [vmem:[%s0 + $0x8] sm:$0xff]
  %v16 = vld [vmem:[%s0 + $0x10] sm:$0xff]
  %v17 = vld [vmem:[%s0 + $0x18] sm:$0xff]
  %v18 = vld [vmem:[%s0 + $0x20] sm:$0xff]
  %v19 = vld [vmem:[%s0 + $0x28] sm:$0xff]
  %v20 = vld [vmem:[%s0 + $0x30] sm:$0xff]
  %v21 = vld [vmem:[%s0 + $0x38] sm:$0xff]
  %v22 = vld [vmem:[%s0 + $0x40] sm:$0xff]
  %v23 = vld [vmem:[%s0 + $0x48] sm:$0xff]
  %v24 = vld [vmem:[%s0 + $0x50] sm:$0xff]
  %v25 = vld [vmem:[%s0 + $0x58] sm:$0xff]
  %v26 = vld [vmem:[%s0 + $0x60] sm:$0xff]
  %v27 = vld [vmem:[%s0 + $0x68] sm:$0xff]
  %v28 = vld [vmem:[%s0 + $0x70] sm:$0xff]
  %v29 = vld [vmem:[%s0 + $0x78] sm:$0xff]
  %v30 = vld [vmem:[%s0 + $0x80] sm:$0xff]
  %v31 = vld [vmem:[%s0 + $0x88] sm:$0xff]
  %v32 = vld [vmem:[%s0 + $0x90] sm:$0xff]
  %v33 = vld [vmem:[%s0 + $0x98] sm:$0xff]
  %v34 = vld [vmem:[%s0 + $0xa0] sm:$0xff]
  %v35 = vld [vmem:[%s0 + $0xa8] sm:$0xff]
  %v36 = vld [vmem:[%s0 + $0xb0] sm:$0xff]
  %v37 = vld [vmem:[%s0 + $0xb8] sm:$0xff]
  %v38 = vld [vmem:[%s0 + $0xc0] sm:$0xff]
  %v39 = vld [vmem:[%s0 + $0xc8] sm:$0xff]
  %v40 = vld [vmem:[%s0 + $0xd0] sm:$0xff]
  %v41 = vld [vmem:[%s0 + $0xd8] sm:$0xff]
  %v42 = vld [vmem:[%s0 + $0xe0] sm:$0xff]
  %v43 = vld [vmem:[%s0 + $0xe8] sm:$0xff]
  %v44 = vld [vmem:[%s0 + $0xf0] sm:$0xff]
  %v45 = vld [vmem:[%s0 + $0xf8] sm:$0xff]
  %v46 = vld [vmem:[%s0 + $0x100] sm:$0xff]
  %v47 = vld [vmem:[%s0 + $0x108] sm:$0xff]
  %v48 = vld [vmem:[%s0 + $0x110] sm:$0xff]
  %v49 = vld [vmem:[%s0 + $0x118] sm:$0xff]
  %v50 = vld [vmem:[%s0 + $0x120] sm:$0xff]
  %v51 = vld [vmem:[%s0 + $0x128] sm:$0xff]
  %v52 = vld [vmem:[%s0 + $0x130] sm:$0xff]
  %v53 = vld [vmem:[%s0 + $0x138] sm:$0xff]
  %v54 = vld [vmem:[%s0 + $0x140] sm:$0xff]
  %v55 = vld [vmem:[%s0 + $0x148] sm:$0xff]
  %v56 = vld [vmem:[%s0 + $0x150] sm:$0xff]
  %v57 = vld [vmem:[%s0 + $0x158] sm:$0xff]
  %v58 = vld [vmem:[%s0 + $0x160] sm:$0xff]
  %v59 = vld [vmem:[%s0 + $0x168] sm:$0xff]
  %v60 = vld [vmem:[%s0 + $0x170] sm:$0xff]
  %v61 = vld [vmem:[%s0 + $0x178] sm:$0xff]
  %v62 = vld [vmem:[%s0 + $0x180] sm:$0xff]
  %v63 = vld [vmem:[%s0 + $0x188] sm:$0xff]
  %v64 = vld [vmem:[%s0 + $0x190] sm:$0xff]
  %v65 = vld [vmem:[%s0 + $0x198] sm:$0xff]
  %v66 = vld [vmem:[%s0 + $0x1a0] sm:$0xff]
  %v67 = vld [vmem:[%s0 + $0x1a8] sm:$0xff]
  %v68 = vld [vmem:[%s0 + $0x1b0] sm:$0xff]
  %v69 = vld [vmem:[%s0 + $0x1b8] sm:$0xff]
  %v70 = vld [vmem:[%s0 + $0x1c0] sm:$0xff]
  %v71 = vld [vmem:[%s0 + $0x1c8] sm:$0xff]
  %v72 = vld [vmem:[%s0 + $0x1d0] sm:$0xff]
  %v73 = vld [vmem:[%s0 + $0x1d8] sm:$0xff]
  %v74 = vld [vmem:[%s0 + $0x1e0] sm:$0xff]
  %v75 = vld [vmem:[%s0 + $0x1e8] sm:$0xff]
  %v76 = vld [vmem:[%s0 + $0x1f0] sm:$0xff]
  %v77 = vld [vmem:[%s0 + $0x1f8] sm:$0xff]
  %v78 = vld [vmem:[%s1] sm:$0x1]
  %v80 = vperm.slane %v78, 0
  %v82 = vmul.f32 %v14, %v80
  %v83 = vmul.f32 %v15, %v80
  %v84 = vmul.f32 %v16, %v80
  %v85 = vmul.f32 %v17, %v80
  %v86 = vmul.f32 %v18, %v80
  %v87 = vmul.f32 %v19, %v80
  %v88 = vmul.f32 %v20, %v80
  %v89 = vmul.f32 %v21, %v80
  %v90 = vmul.f32 %v22, %v80
  %v91 = vmul.f32 %v23, %v80
  %v92 = vmul.f32 %v24, %v80
  %v93 = vmul.f32 %v25, %v80
  %v94 = vmul.f32 %v26, %v80
  %v95 = vmul.f32 %v27, %v80
  %v96 = vmul.f32 %v28, %v80
  %v97 = vmul.f32 %v29, %v80
  %v98 = vmul.f32 %v30, %v80
  %v99 = vmul.f32 %v31, %v80
  %v100 = vmul.f32 %v32, %v80
  %v101 = vmul.f32 %v33, %v80
  %v102 = vmul.f32 %v34, %v80
  %v103 = vmul.f32 %v35, %v80
  %v104 = vmul.f32 %v36, %v80
  %v105 = vmul.f32 %v37, %v80
  %v106 = vmul.f32 %v38, %v80
  %v107 = vmul.f32 %v39, %v80
  %v108 = vmul.f32 %v40, %v80
  %v109 = vmul.f32 %v41, %v80
  %v110 = vmul.f32 %v42, %v80
  %v111 = vmul.f32 %v43, %v80
  %v112 = vmul.f32 %v44, %v80
  %v113 = vmul.f32 %v45, %v80
  %v114 = vmul.f32 %v46, %v80
  %v115 = vmul.f32 %v47, %v80
  %v116 = vmul.f32 %v48, %v80
  %v117 = vmul.f32 %v49, %v80
  %v118 = vmul.f32 %v50, %v80
  %v119 = vmul.f32 %v51, %v80
  %v120 = vmul.f32 %v52, %v80
  %v121 = vmul.f32 %v53, %v80
  %v122 = vmul.f32 %v54, %v80
  %v123 = vmul.f32 %v55, %v80
  %v124 = vmul.f32 %v56, %v80
  %v125 = vmul.f32 %v57, %v80
  %v126 = vmul.f32 %v58, %v80
  %v127 = vmul.f32 %v59, %v80
  %v128 = vmul.f32 %v60, %v80
  %v129 = vmul.f32 %v61, %v80
  %v130 = vmul.f32 %v62, %v80
  %v131 = vmul.f32 %v63, %v80
  %v132 = vmul.f32 %v64, %v80
  %v133 = vmul.f32 %v65, %v80
  %v134 = vmul.f32 %v66, %v80
  %v135 = vmul.f32 %v67, %v80
  %v136 = vmul.f32 %v68, %v80
  %v137 = vmul.f32 %v69, %v80
  %v138 = vmul.f32 %v70, %v80
  %v139 = vmul.f32 %v71, %v80
  %v140 = vmul.f32 %v72, %v80
  %v141 = vmul.f32 %v73, %v80
  %v142 = vmul.f32 %v74, %v80
  %v143 = vmul.f32 %v75, %v80
  %v144 = vmul.f32 %v76, %v80
  %v145 = vmul.f32 %v77, %v80
  %v146 = vld [vmem:[%s2] sm:$0x1]
  %v148 = vperm.slane %v146, 0
  %v150 = vadd.f32 %v82, %v148
  %v151 = vadd.f32 %v83, %v148
  %v152 = vadd.f32 %v84, %v148
  %v153 = vadd.f32 %v85, %v148
  %v154 = vadd.f32 %v86, %v148
  %v155 = vadd.f32 %v87, %v148
  %v156 = vadd.f32 %v88, %v148
  %v157 = vadd.f32 %v89, %v148
  %v158 = vadd.f32 %v90, %v148
  %v159 = vadd.f32 %v91, %v148
  %v160 = vadd.f32 %v92, %v148
  %v161 = vadd.f32 %v93, %v148
  %v162 = vadd.f32 %v94, %v148
  %v163 = vadd.f32 %v95, %v148
  %v164 = vadd.f32 %v96, %v148
  %v165 = vadd.f32 %v97, %v148
  %v166 = vadd.f32 %v98, %v148
  %v167 = vadd.f32 %v99, %v148
  %v168 = vadd.f32 %v100, %v148
  %v169 = vadd.f32 %v101, %v148
  %v170 = vadd.f32 %v102, %v148
  %v171 = vadd.f32 %v103, %v148
  %v172 = vadd.f32 %v104, %v148
  %v173 = vadd.f32 %v105, %v148
  %v174 = vadd.f32 %v106, %v148
  %v175 = vadd.f32 %v107, %v148
  %v176 = vadd.f32 %v108, %v148
  %v177 = vadd.f32 %v109, %v148
  %v178 = vadd.f32 %v110, %v148
  %v179 = vadd.f32 %v111, %v148
  %v180 = vadd.f32 %v112, %v148
  %v181 = vadd.f32 %v113, %v148
  %v182 = vadd.f32 %v114, %v148
  %v183 = vadd.f32 %v115, %v148
  %v184 = vadd.f32 %v116, %v148
  %v185 = vadd.f32 %v117, %v148
  %v186 = vadd.f32 %v118, %v148
  %v187 = vadd.f32 %v119, %v148
  %v188 = vadd.f32 %v120, %v148
  %v189 = vadd.f32 %v121, %v148
  %v190 = vadd.f32 %v122, %v148
  %v191 = vadd.f32 %v123, %v148
  %v192 = vadd.f32 %v124, %v148
  %v193 = vadd.f32 %v125, %v148
  %v194 = vadd.f32 %v126, %v148
  %v195 = vadd.f32 %v127, %v148
  %v196 = vadd.f32 %v128, %v148
  %v197 = vadd.f32 %v129, %v148
  %v198 = vadd.f32 %v130, %v148
  %v199 = vadd.f32 %v131, %v148
  %v200 = vadd.f32 %v132, %v148
  %v201 = vadd.f32 %v133, %v148
  %v202 = vadd.f32 %v134, %v148
  %v203 = vadd.f32 %v135, %v148
  %v204 = vadd.f32 %v136, %v148
  %v205 = vadd.f32 %v137, %v148
  %v206 = vadd.f32 %v138, %v148
  %v207 = vadd.f32 %v139, %v148
  %v208 = vadd.f32 %v140, %v148
  %v209 = vadd.f32 %v141, %v148
  %v210 = vadd.f32 %v142, %v148
  %v211 = vadd.f32 %v143, %v148
  %v212 = vadd.f32 %v144, %v148
  %v213 = vadd.f32 %v145, %v148
  %214 = vst [vmem:[%s3] sm:$0xff] %v150
  %215 = vst [vmem:[%s3 + $0x8] sm:$0xff] %v151
  %216 = vst [vmem:[%s3 + $0x10] sm:$0xff] %v152
  %217 = vst [vmem:[%s3 + $0x18] sm:$0xff] %v153
  %218 = vst [vmem:[%s3 + $0x20] sm:$0xff] %v154
  %219 = vst [vmem:[%s3 + $0x28] sm:$0xff] %v155
  %220 = vst [vmem:[%s3 + $0x30] sm:$0xff] %v156
  %221 = vst [vmem:[%s3 + $0x38] sm:$0xff] %v157
  %222 = vst [vmem:[%s3 + $0x40] sm:$0xff] %v158
  %223 = vst [vmem:[%s3 + $0x48] sm:$0xff] %v159
  %224 = vst [vmem:[%s3 + $0x50] sm:$0xff] %v160
  %225 = vst [vmem:[%s3 + $0x58] sm:$0xff] %v161
  %226 = vst [vmem:[%s3 + $0x60] sm:$0xff] %v162
  %227 = vst [vmem:[%s3 + $0x68] sm:$0xff] %v163
  %228 = vst [vmem:[%s3 + $0x70] sm:$0xff] %v164
  %229 = vst [vmem:[%s3 + $0x78] sm:$0xff] %v165
  %230 = vst [vmem:[%s3 + $0x80] sm:$0xff] %v166
  %231 = vst [vmem:[%s3 + $0x88] sm:$0xff] %v167
  %232 = vst [vmem:[%s3 + $0x90] sm:$0xff] %v168
  %233 = vst [vmem:[%s3 + $0x98] sm:$0xff] %v169
  %234 = vst [vmem:[%s3 + $0xa0] sm:$0xff] %v170
  %235 = vst [vmem:[%s3 + $0xa8] sm:$0xff] %v171
  %236 = vst [vmem:[%s3 + $0xb0] sm:$0xff] %v172
  %237 = vst [vmem:[%s3 + $0xb8] sm:$0xff] %v173
  %238 = vst [vmem:[%s3 + $0xc0] sm:$0xff] %v174
  %239 = vst [vmem:[%s3 + $0xc8] sm:$0xff] %v175
  %240 = vst [vmem:[%s3 + $0xd0] sm:$0xff] %v176
  %241 = vst [vmem:[%s3 + $0xd8] sm:$0xff] %v177
  %242 = vst [vmem:[%s3 + $0xe0] sm:$0xff] %v178
  %243 = vst [vmem:[%s3 + $0xe8] sm:$0xff] %v179
  %244 = vst [vmem:[%s3 + $0xf0] sm:$0xff] %v180
  %245 = vst [vmem:[%s3 + $0xf8] sm:$0xff] %v181
  %246 = vst [vmem:[%s3 + $0x100] sm:$0xff] %v182
  %247 = vst [vmem:[%s3 + $0x108] sm:$0xff] %v183
  %248 = vst [vmem:[%s3 + $0x110] sm:$0xff] %v184
  %249 = vst [vmem:[%s3 + $0x118] sm:$0xff] %v185
  %250 = vst [vmem:[%s3 + $0x120] sm:$0xff] %v186
  %251 = vst [vmem:[%s3 + $0x128] sm:$0xff] %v187
  %252 = vst [vmem:[%s3 + $0x130] sm:$0xff] %v188
  %253 = vst [vmem:[%s3 + $0x138] sm:$0xff] %v189
  %254 = vst [vmem:[%s3 + $0x140] sm:$0xff] %v190
  %255 = vst [vmem:[%s3 + $0x148] sm:$0xff] %v191
  %256 = vst [vmem:[%s3 + $0x150] sm:$0xff] %v192
  %257 = vst [vmem:[%s3 + $0x158] sm:$0xff] %v193
  %258 = vst [vmem:[%s3 + $0x160] sm:$0xff] %v194
  %259 = vst [vmem:[%s3 + $0x168] sm:$0xff] %v195
  %260 = vst [vmem:[%s3 + $0x170] sm:$0xff] %v196
  %261 = vst [vmem:[%s3 + $0x178] sm:$0xff] %v197
  %262 = vst [vmem:[%s3 + $0x180] sm:$0xff] %v198
  %263 = vst [vmem:[%s3 + $0x188] sm:$0xff] %v199
  %264 = vst [vmem:[%s3 + $0x190] sm:$0xff] %v200
  %265 = vst [vmem:[%s3 + $0x198] sm:$0xff] %v201
  %266 = vst [vmem:[%s3 + $0x1a0] sm:$0xff] %v202
  %267 = vst [vmem:[%s3 + $0x1a8] sm:$0xff] %v203
  %268 = vst [vmem:[%s3 + $0x1b0] sm:$0xff] %v204
  %269 = vst [vmem:[%s3 + $0x1b8] sm:$0xff] %v205
  %270 = vst [vmem:[%s3 + $0x1c0] sm:$0xff] %v206
  %271 = vst [vmem:[%s3 + $0x1c8] sm:$0xff] %v207
  %272 = vst [vmem:[%s3 + $0x1d0] sm:$0xff] %v208
  %273 = vst [vmem:[%s3 + $0x1d8] sm:$0xff] %v209
  %274 = vst [vmem:[%s3 + $0x1e0] sm:$0xff] %v210
  %275 = vst [vmem:[%s3 + $0x1e8] sm:$0xff] %v211
  %276 = vst [vmem:[%s3 + $0x1f0] sm:$0xff] %v212
  %277 = vst [vmem:[%s3 + $0x1f8] sm:$0xff] %v213
  // Predicated region
  $region14: #{basic_conv2d.3} parent=0 // pred_check
    _
  $region15: #{basic_conv2d.3} parent=0 // pred_check_branch
    %279 = sbr.rel (0) target = $region17
  $region16: #{basic_conv2d.3} parent=0 // pred_region
    _
  $region17: #{basic_conv2d.3} parent=0 // pred_fallthru
    _
  // Predicated region
  $region18: #{basic_conv2d.3} parent=0 // pred_check
    _
  $region19: #{basic_conv2d.3} parent=0 // pred_check_branch
    %281 = sbr.rel (0) target = $region21
  $region20: #{basic_conv2d.3} parent=0 // pred_region
    _
  $region21: #{basic_conv2d.3} parent=0 // pred_fallthru
    _

// kernel: basic_conv2d.2
$region0: #{basic_conv2d.2}
  #allocation0 [shape = 'u32[]', space=smem, size = 0x4, offset = 0x4, fixed_abs, tag = 'smem constant byte address 0x4 - core index']
  #allocation1 [shape = 'u32[72,128]{1,0:T(1,128)}', space=vmem, size = 0x9000, scoped, tag = 'internal scratch']
  %s0 = inlined_call_operand.vmem [shape: f32[2,2,10,18,4], index: 0, kind: input, shape index: {}]
  %s1 = inlined_call_operand.vmem [shape: f32[36,128], index: 1, kind: input, shape index: {}]
  %s2 = inlined_call_operand.vmem [shape: f32[512,128], index: 2, kind: output, shape index: {0}]
  %s3 = inlined_call_operand.vmem [shape: f32[2,2,128], index: 3, kind: output, shape index: {1}]
  %4 = xla_tuple %s2, %s3
  %s5 = sld [smem:[#allocation0]]
  $region53: #{basic_conv2d.2} parent=0
    _
  %s7 = ssub.s32 1, %s5
  %s8 = scalar_select 0, %s7, %s5
  loop: start=0, step=1, limit=6
  $region2: #{basic_conv2d.2} parent=0 // loop_pre_header
    _
  $region3: #{basic_conv2d.2} parent=0 // loop_header
    %s10 = sphi 0, %s14
    %p11 = scmp.ge.s32.totalorder %s10, 6
    %s17 = sphi 0, %s29
    %s18 = sphi 0, %s25
    %s19 = sphi 0, %s17
    %s20 = sphi 0, %s18
    %s21 = sphi 0, %s19
    %s22 = sphi 0, %s20
    %s34 = sphi 0, %s36
    %s37 = sphi 0, %s34
    %s38 = sphi 0, %s37
    %s54 = sphi 0, %s38
    %s58 = sphi 0, %s58
    %s60 = sphi 0, %s58
    %s61 = sphi 0, %s60
    %s75 = sphi 0, %s61
    %s85 = sphi 0, %s87
    %s88 = sphi 0, %s85
    %s89 = sphi 0, %s88
    %s105 = sphi 0, %s89
    %s111 = sphi 0, %s113
    %s114 = sphi 0, %s111
    %s115 = sphi 0, %s114
    %s131 = sphi 0, %s115
  $region4: #{basic_conv2d.2} parent=0 // loop_header_branch
    %13 = sbr.rel (%p11) target = $region8
  $region5: #{basic_conv2d.2} parent=0 // loop_body
    %s15 = ssub.s32 %s10, 1
    %s16 = ssub.s32 %s10, 2
    %s23 = sadd.s32 1, %s18
    %p24 = scmp.ge.s32.totalorder %s23, 2
    %s25 = scalar_select %p24, 0, %s23
    %s26 = sadd.s32 1, %s17
    %s27 = scalar_select %p24, %s26, %s17
    %p28 = scmp.ge.s32.totalorder %s27, 2
    %s29 = scalar_select %p28, 0, %s27
    %s30 = ssub.s32 %s17, %s29
    %s31 = ssub.s32 %s18, %s25
    %s32 = sor.u32 %s30, %s31
    %p33 = scmp.eq.s32.totalorder %s32, 0
    %s35 = sadd.s32 %s34, 1
    %s36 = scalar_select %p33, %s34, %s35
    %p39 = pneg %p33
    %p40 = scmp.eq.s32.totalorder %s10, 3
    %p41 = por %p39, %p40
    %p42 = scmp.ne.s32.totalorder %s34, %s37
    %p43 = scmp.eq.s32.totalorder %s10, 0
    %p44 = por %p42, %p43
    %p45 = scmp.ne.s32.totalorder %s34, %s37
    %p46 = scmp.eq.s32.totalorder %s15, 3
    %p47 = por %p45, %p46
    %p48 = scmp.ne.s32.totalorder %s37, %s38
    %p49 = scmp.eq.s32.totalorder %s15, 0
    %p50 = por %p48, %p49
    %p51 = scmp.ne.s32.totalorder %s37, %s38
    %p52 = scmp.eq.s32.totalorder %s16, 3
    %p53 = por %p51, %p52
    %p55 = scmp.ne.s32.totalorder %s38, %s54
    %p56 = scmp.eq.s32.totalorder %s16, 0
    %p57 = por %p55, %p56
    %s59 = sadd.s32 %s58, 1
    %p62 = scmp.eq.s32.totalorder %s10, 3
    %p63 = scmp.ne.s32.totalorder %s58, %s60
    %p64 = scmp.eq.s32.totalorder %s10, 0
    %p65 = por %p63, %p64
    %p66 = scmp.ne.s32.totalorder %s58, %s60
    %p67 = scmp.eq.s32.totalorder %s15, 3
    %p68 = por %p66, %p67
    %p69 = scmp.ne.s32.totalorder %s60, %s61
    %p70 = scmp.eq.s32.totalorder %s15, 0
    %p71 = por %p69, %p70
    %p72 = scmp.ne.s32.totalorder %s60, %s61
    %p73 = scmp.eq.s32.totalorder %s16, 3
    %p74 = por %p72, %p73
    %p76 = scmp.ne.s32.totalorder %s61, %s75
    %p77 = scmp.eq.s32.totalorder %s16, 0
    %p78 = por %p76, %p77
    %s79 = smul.u32 %s17, 2
    %s80 = sadd.s32 %s79, %s18
    %s81 = smul.u32 %s29, 2
    %s82 = sadd.s32 %s81, %s25
    %s83 = ssub.s32 %s80, %s82
    %p84 = scmp.eq.s32.totalorder %s83, 0
    %s86 = sadd.s32 %s85, 1
    %s87 = scalar_select %p84, %s85, %s86
    %p90 = pneg %p84
    %p91 = scmp.eq.s32.totalorder %s10, 3
    %p92 = por %p90, %p91
    %p93 = scmp.ne.s32.totalorder %s85, %s88
    %p94 = scmp.eq.s32.totalorder %s10, 0
    %p95 = por %p93, %p94
    %p96 = scmp.ne.s32.totalorder %s85, %s88
    %p97 = scmp.eq.s32.totalorder %s15, 3
    %p98 = por %p96, %p97
    %p99 = scmp.ne.s32.totalorder %s88, %s89
    %p100 = scmp.eq.s32.totalorder %s15, 0
    %p101 = por %p99, %p100
    %p102 = scmp.ne.s32.totalorder %s88, %s89
    %p103 = scmp.eq.s32.totalorder %s16, 3
    %p104 = por %p102, %p103
    %p106 = scmp.ne.s32.totalorder %s89, %s105
    %p107 = scmp.eq.s32.totalorder %s16, 0
    %p108 = por %p106, %p107
    %s109 = ssub.s32 %s17, %s29
    %p110 = scmp.eq.s32.totalorder %s109, 0
    %s112 = sadd.s32 %s111, 1
    %s113 = scalar_select %p110, %s111, %s112
    %p116 = pneg %p110
    %p117 = scmp.eq.s32.totalorder %s10, 3
    %p118 = por %p116, %p117
    %p119 = scmp.ne.s32.totalorder %s111, %s114
    %p120 = scmp.eq.s32.totalorder %s10, 0
    %p121 = por %p119, %p120
    %p122 = scmp.ne.s32.totalorder %s111, %s114
    %p123 = scmp.eq.s32.totalorder %s15, 3
    %p124 = por %p122, %p123
    %p125 = scmp.ne.s32.totalorder %s114, %s115
    %p126 = scmp.eq.s32.totalorder %s15, 0
    %p127 = por %p125, %p126
    %p128 = scmp.ne.s32.totalorder %s114, %s115
    %p129 = scmp.eq.s32.totalorder %s16, 3
    %p130 = por %p128, %p129
    %p132 = scmp.ne.s32.totalorder %s115, %s131
    %p133 = scmp.eq.s32.totalorder %s16, 0
    %p134 = por %p132, %p133
    %p135 = scmp.le.s32.totalorder 1, %s10
    %p136 = scmp.lt.s32.totalorder %s10, 5
    %p137 = pnand %p135, %p136
    %p138 = pneg %p137
    // Predicated region
    $region9: #{basic_conv2d.2} parent=5 // pred_check
      _
    $region10: #{basic_conv2d.2} parent=5 // pred_check_branch
      %140 = sbr.rel (%p137) target = $region12
    $region11: #{basic_conv2d.2} parent=5 // pred_region
      %s141 = ssub.s32 %s10, 1
      // Predicated region
      $region13: #{basic_conv2d.2} parent=11 // pred_check
        %p142 = pneg %p71
      $region14: #{basic_conv2d.2} parent=11 // pred_check_branch
        %144 = sbr.rel (%p142) target = $region16
      $region15: #{basic_conv2d.2} parent=11 // pred_region
        _
      $region16: #{basic_conv2d.2} parent=11 // pred_fallthru
        _
    $region12: #{basic_conv2d.2} parent=5 // pred_fallthru
      _
    %p145 = scmp.lt.s32.totalorder %s10, 4
    // Predicated region
    $region17: #{basic_conv2d.2} parent=5 // pred_check
      %p146 = pneg %p145
    $region18: #{basic_conv2d.2} parent=5 // pred_check_branch
      %148 = sbr.rel (%p146) target = $region20
    $region19: #{basic_conv2d.2} parent=5 // pred_region
      // Predicated region
      $region21: #{basic_conv2d.2} parent=19 // pred_check
        %p149 = pneg %p44
      $region22: #{basic_conv2d.2} parent=19 // pred_check_branch
        %151 = sbr.rel (%p149) target = $region24
      $region23: #{basic_conv2d.2} parent=19 // pred_region
        %p152 = scmp.lt.s32.totalorder %s17, 1
        %s153 = scalar_select %p152, %s17, 1
        %p154 = scmp.lt.s32.totalorder %s18, 1
        %s155 = scalar_select %p154, %s18, 1
        %s156 = smul.addr %s155, 30
        %s157 = smul.addr %s153, 60
        %s158 = sadd.s32 %s156, %s157
        %s159 = smul.addr %s158, 8
        %s160 = scalar_lea.vmem %s0, %s159
      $region24: #{basic_conv2d.2} parent=19 // pred_fallthru
        _
    $region20: #{basic_conv2d.2} parent=5 // pred_fallthru
      _
    %p161 = scmp.le.s32.totalorder 1, %s10
    %p162 = scmp.lt.s32.totalorder %s10, 5
    %p163 = pnand %p161, %p162
    %p164 = pneg %p163
    // Predicated region
    $region25: #{basic_conv2d.2} parent=5 // pred_check
      _
    $region26: #{basic_conv2d.2} parent=5 // pred_check_branch
      %166 = sbr.rel (%p163) target = $region28
    $region27: #{basic_conv2d.2} parent=5 // pred_region
      %s167 = ssub.s32 %s10, 1
      %p168 = scmp.lt.s32.totalorder %s19, 1
      %s169 = scalar_select %p168, %s19, 1
      %p170 = scmp.lt.s32.totalorder %s20, 1
      %s171 = scalar_select %p170, %s20, 1
      %s172 = smul.addr %s171, 30
      %s173 = smul.addr %s169, 60
      %s174 = sadd.s32 %s172, %s173
      %s175 = smul.addr %s174, 8
      %s176 = scalar_lea.vmem %s0, %s175
      %p177 = pneg %p50
      %p178 = pneg %p47
      %p179 = pneg %p71
      %p180 = pneg %p68
      %p181 = pneg %p101
      %p182 = pneg %p98
      %s183 = smul.u32 %s19, 2
      %s184 = sadd.s32 %s183, %s20
      %s185 = smul.u32 16, %s184
      %p186 = scmp.lt.s32.totalorder %s185, 63
      %s187 = scalar_select %p186, %s185, 63
      %s188 = smul.addr %s187, 8
      %s189 = scalar_lea.vmem %s2, %s188
      %p190 = pneg %p127
      %p191 = pneg %p124
      %p192 = scmp.lt.s32.totalorder %s19, 1
      %s193 = scalar_select %p192, %s19, 1
      %s194 = smul.addr %s193, 2
      %s195 = scalar_lea.vmem %s3, %s194
      %p196 = scmp.lt.s32.totalorder %s19, 1
      %s197 = scalar_select %p196, %s19, 1
      %p198 = scmp.lt.s32.totalorder %s20, 1
      %s199 = scalar_select %p198, %s20, 1
      %s200 = smul.addr %s199, 30
      %s201 = smul.addr %s197, 60
      %s202 = sadd.s32 %s200, %s201
      %s203 = smul.addr %s202, 8
      %s204 = scalar_lea.vmem %s0, %s203
      %s205 = smul.u32 %s19, 2
      %s206 = sadd.s32 %s205, %s20
      %s207 = smul.u32 16, %s206
      %p208 = scmp.lt.s32.totalorder %s207, 63
      %s209 = scalar_select %p208, %s207, 63
      %s210 = smul.addr %s209, 8
      %s211 = scalar_lea.vmem %s2, %s210
      %s212 = smul.u32 %s19, 2
      %s213 = sadd.s32 %s212, %s20
      %s214 = smul.u32 16, %s213
      %p215 = scmp.lt.s32.totalorder %s19, 1
      %s216 = scalar_select %p215, %s19, 1
      %s217 = smul.addr %s216, 2
      %s218 = scalar_lea.vmem %s3, %s217
      %v219 = vld [vmem:[%s204] sm:$0xff]
      %v220 = vld [vmem:[%s204 + $0x8] sm:$0xff]
      %v221 = vld [vmem:[%s204 + $0x18] sm:$0xff]
      %v222 = vld [vmem:[%s204 + $0x20] sm:$0xff]
      %v223 = vld [vmem:[%s204 + $0x30] sm:$0xff]
      %v224 = vld [vmem:[%s204 + $0x38] sm:$0xff]
      %v225 = vld [vmem:[%s204 + $0x48] sm:$0xff]
      %v226 = vld [vmem:[%s204 + $0x50] sm:$0xff]
      %v227 = vld [vmem:[%s204 + $0x60] sm:$0xff]
      %v228 = vld [vmem:[%s204 + $0x68] sm:$0xff]
      %v229 = vld [vmem:[%s204 + $0x78] sm:$0xff]
      %v230 = vld [vmem:[%s204 + $0x80] sm:$0xff]
      %v231 = vld [vmem:[%s204 + $0x90] sm:$0xff]
      %v232 = vld [vmem:[%s204 + $0x98] sm:$0xff]
      %v233 = vld [vmem:[%s204 + $0xa8] sm:$0xff]
      %v234 = vld [vmem:[%s204 + $0xb0] sm:$0xff]
      %v235 = vld [vmem:[%s204 + $0x1] sm:$0xff]
      %v236 = vld [vmem:[%s204 + $0x9] sm:$0xff]
      %v237 = vld [vmem:[%s204 + $0x19] sm:$0xff]
      %v238 = vld [vmem:[%s204 + $0x21] sm:$0xff]
      %v239 = vld [vmem:[%s204 + $0x31] sm:$0xff]
      %v240 = vld [vmem:[%s204 + $0x39] sm:$0xff]
      %v241 = vld [vmem:[%s204 + $0x49] sm:$0xff]
      %v242 = vld [vmem:[%s204 + $0x51] sm:$0xff]
      %v243 = vld [vmem:[%s204 + $0x61] sm:$0xff]
      %v244 = vld [vmem:[%s204 + $0x69] sm:$0xff]
      %v245 = vld [vmem:[%s204 + $0x79] sm:$0xff]
      %v246 = vld [vmem:[%s204 + $0x81] sm:$0xff]
      %v247 = vld [vmem:[%s204 + $0x91] sm:$0xff]
      %v248 = vld [vmem:[%s204 + $0x99] sm:$0xff]
      %v249 = vld [vmem:[%s204 + $0xa9] sm:$0xff]
      %v250 = vld [vmem:[%s204 + $0xb1] sm:$0xff]
      %v251 = vld [vmem:[%s204 + $0x2] sm:$0xff]
      %v252 = vld [vmem:[%s204 + $0xa] sm:$0xff]
      %v253 = vld [vmem:[%s204 + $0x1a] sm:$0xff]
      %v254 = vld [vmem:[%s204 + $0x22] sm:$0xff]
      %v255 = vld [vmem:[%s204 + $0x32] sm:$0xff]
      %v256 = vld [vmem:[%s204 + $0x3a] sm:$0xff]
      %v257 = vld [vmem:[%s204 + $0x4a] sm:$0xff]
      %v258 = vld [vmem:[%s204 + $0x52] sm:$0xff]
      %v259 = vld [vmem:[%s204 + $0x62] sm:$0xff]
      %v260 = vld [vmem:[%s204 + $0x6a] sm:$0xff]
      %v261 = vld [vmem:[%s204 + $0x7a] sm:$0xff]
      %v262 = vld [vmem:[%s204 + $0x82] sm:$0xff]
      %v263 = vld [vmem:[%s204 + $0x92] sm:$0xff]
      %v264 = vld [vmem:[%s204 + $0x9a] sm:$0xff]
      %v265 = vld [vmem:[%s204 + $0xaa] sm:$0xff]
      %v266 = vld [vmem:[%s204 + $0xb2] sm:$0xff]
      %s267 = scalar_lea.vmem %s204, 24
      %v268 = vld [vmem:[%s267] sm:$0xff]
      %v269 = vld [vmem:[%s267 + $0x8] sm:$0xff]
      %v270 = vld [vmem:[%s267 + $0x18] sm:$0xff]
      %v271 = vld [vmem:[%s267 + $0x20] sm:$0xff]
      %v272 = vld [vmem:[%s267 + $0x30] sm:$0xff]
      %v273 = vld [vmem:[%s267 + $0x38] sm:$0xff]
      %v274 = vld [vmem:[%s267 + $0x48] sm:$0xff]
      %v275 = vld [vmem:[%s267 + $0x50] sm:$0xff]
      %v276 = vld [vmem:[%s267 + $0x60] sm:$0xff]
      %v277 = vld [vmem:[%s267 + $0x68] sm:$0xff]
      %v278 = vld [vmem:[%s267 + $0x78] sm:$0xff]
      %v279 = vld [vmem:[%s267 + $0x80] sm:$0xff]
      %v280 = vld [vmem:[%s267 + $0x90] sm:$0xff]
      %v281 = vld [vmem:[%s267 + $0x98] sm:$0xff]
      %v282 = vld [vmem:[%s267 + $0xa8] sm:$0xff]
      %v283 = vld [vmem:[%s267 + $0xb0] sm:$0xff]
      %v284 = vld [vmem:[%s267 + $0x1] sm:$0xff]
      %v285 = vld [vmem:[%s267 + $0x9] sm:$0xff]
      %v286 = vld [vmem:[%s267 + $0x19] sm:$0xff]
      %v287 = vld [vmem:[%s267 + $0x21] sm:$0xff]
      %v288 = vld [vmem:[%s267 + $0x31] sm:$0xff]
      %v289 = vld [vmem:[%s267 + $0x39] sm:$0xff]
      %v290 = vld [vmem:[%s267 + $0x49] sm:$0xff]
      %v291 = vld [vmem:[%s267 + $0x51] sm:$0xff]
      %v292 = vld [vmem:[%s267 + $0x61] sm:$0xff]
      %v293 = vld [vmem:[%s267 + $0x69] sm:$0xff]
      %v294 = vld [vmem:[%s267 + $0x79] sm:$0xff]
      %v295 = vld [vmem:[%s267 + $0x81] sm:$0xff]
      %v296 = vld [vmem:[%s267 + $0x91] sm:$0xff]
      %v297 = vld [vmem:[%s267 + $0x99] sm:$0xff]
      %v298 = vld [vmem:[%s267 + $0xa9] sm:$0xff]
      %v299 = vld [vmem:[%s267 + $0xb1] sm:$0xff]
      %v300 = vld [vmem:[%s267 + $0x2] sm:$0xff]
      %v301 = vld [vmem:[%s267 + $0xa] sm:$0xff]
      %v302 = vld [vmem:[%s267 + $0x1a] sm:$0xff]
      %v303 = vld [vmem:[%s267 + $0x22] sm:$0xff]
      %v304 = vld [vmem:[%s267 + $0x32] sm:$0xff]
      %v305 = vld [vmem:[%s267 + $0x3a] sm:$0xff]
      %v306 = vld [vmem:[%s267 + $0x4a] sm:$0xff]
      %v307 = vld [vmem:[%s267 + $0x52] sm:$0xff]
      %v308 = vld [vmem:[%s267 + $0x62] sm:$0xff]
      %v309 = vld [vmem:[%s267 + $0x6a] sm:$0xff]
      %v310 = vld [vmem:[%s267 + $0x7a] sm:$0xff]
      %v311 = vld [vmem:[%s267 + $0x82] sm:$0xff]
      %v312 = vld [vmem:[%s267 + $0x92] sm:$0xff]
      %v313 = vld [vmem:[%s267 + $0x9a] sm:$0xff]
      %v314 = vld [vmem:[%s267 + $0xaa] sm:$0xff]
      %v315 = vld [vmem:[%s267 + $0xb2] sm:$0xff]
      %s316 = scalar_lea.vmem %s204, 48
      %v317 = vld [vmem:[%s316] sm:$0xff]
      %v318 = vld [vmem:[%s316 + $0x8] sm:$0xff]
      %v319 = vld [vmem:[%s316 + $0x18] sm:$0xff]
      %v320 = vld [vmem:[%s316 + $0x20] sm:$0xff]
      %v321 = vld [vmem:[%s316 + $0x30] sm:$0xff]
      %v322 = vld [vmem:[%s316 + $0x38] sm:$0xff]
      %v323 = vld [vmem:[%s316 + $0x48] sm:$0xff]
      %v324 = vld [vmem:[%s316 + $0x50] sm:$0xff]
      %v325 = vld [vmem:[%s316 + $0x60] sm:$0xff]
      %v326 = vld [vmem:[%s316 + $0x68] sm:$0xff]
      %v327 = vld [vmem:[%s316 + $0x78] sm:$0xff]
      %v328 = vld [vmem:[%s316 + $0x80] sm:$0xff]
      %v329 = vld [vmem:[%s316 + $0x90] sm:$0xff]
      %v330 = vld [vmem:[%s316 + $0x98] sm:$0xff]
      %v331 = vld [vmem:[%s316 + $0xa8] sm:$0xff]
      %v332 = vld [vmem:[%s316 + $0xb0] sm:$0xff]
      %v333 = vld [vmem:[%s316 + $0x1] sm:$0xff]
      %v334 = vld [vmem:[%s316 + $0x9] sm:$0xff]
      %v335 = vld [vmem:[%s316 + $0x19] sm:$0xff]
      %v336 = vld [vmem:[%s316 + $0x21] sm:$0xff]
      %v337 = vld [vmem:[%s316 + $0x31] sm:$0xff]
      %v338 = vld [vmem:[%s316 + $0x39] sm:$0xff]
      %v339 = vld [vmem:[%s316 + $0x49] sm:$0xff]
      %v340 = vld [vmem:[%s316 + $0x51] sm:$0xff]
      %v341 = vld [vmem:[%s316 + $0x61] sm:$0xff]
      %v342 = vld [vmem:[%s316 + $0x69] sm:$0xff]
      %v343 = vld [vmem:[%s316 + $0x79] sm:$0xff]
      %v344 = vld [vmem:[%s316 + $0x81] sm:$0xff]
      %v345 = vld [vmem:[%s316 + $0x91] sm:$0xff]
      %v346 = vld [vmem:[%s316 + $0x99] sm:$0xff]
      %v347 = vld [vmem:[%s316 + $0xa9] sm:$0xff]
      %v348 = vld [vmem:[%s316 + $0xb1] sm:$0xff]
      %v349 = vld [vmem:[%s316 + $0x2] sm:$0xff]
      %v350 = vld [vmem:[%s316 + $0xa] sm:$0xff]
      %v351 = vld [vmem:[%s316 + $0x1a] sm:$0xff]
      %v352 = vld [vmem:[%s316 + $0x22] sm:$0xff]
      %v353 = vld [vmem:[%s316 + $0x32] sm:$0xff]
      %v354 = vld [vmem:[%s316 + $0x3a] sm:$0xff]
      %v355 = vld [vmem:[%s316 + $0x4a] sm:$0xff]
      %v356 = vld [vmem:[%s316 + $0x52] sm:$0xff]
      %v357 = vld [vmem:[%s316 + $0x62] sm:$0xff]
      %v358 = vld [vmem:[%s316 + $0x6a] sm:$0xff]
      %v359 = vld [vmem:[%s316 + $0x7a] sm:$0xff]
      %v360 = vld [vmem:[%s316 + $0x82] sm:$0xff]
      %v361 = vld [vmem:[%s316 + $0x92] sm:$0xff]
      %v362 = vld [vmem:[%s316 + $0x9a] sm:$0xff]
      %v363 = vld [vmem:[%s316 + $0xaa] sm:$0xff]
      %v364 = vld [vmem:[%s316 + $0xb2] sm:$0xff]
      %381 = vrot.lane.b32.xlu0 %v235, 4
      %v382 = vpop.permute.xlu0 %381
      %383 = vrot.lane.b32.xlu0 %v236, 4
      %v384 = vpop.permute.xlu0 %383
      %385 = vrot.lane.b32.xlu0 %v237, 4
      %v386 = vpop.permute.xlu0 %385
      %387 = vrot.lane.b32.xlu0 %v238, 4
      %v388 = vpop.permute.xlu0 %387
      %389 = vrot.lane.b32.xlu0 %v239, 4
      %v390 = vpop.permute.xlu0 %389
      %391 = vrot.lane.b32.xlu0 %v240, 4
      %v392 = vpop.permute.xlu0 %391
      %393 = vrot.lane.b32.xlu0 %v241, 4
      %v394 = vpop.permute.xlu0 %393
      %395 = vrot.lane.b32.xlu0 %v242, 4
      %v396 = vpop.permute.xlu0 %395
      %397 = vrot.lane.b32.xlu0 %v243, 4
      %v398 = vpop.permute.xlu0 %397
      %399 = vrot.lane.b32.xlu0 %v244, 4
      %v400 = vpop.permute.xlu0 %399
      %401 = vrot.lane.b32.xlu0 %v245, 4
      %v402 = vpop.permute.xlu0 %401
      %403 = vrot.lane.b32.xlu0 %v246, 4
      %v404 = vpop.permute.xlu0 %403
      %405 = vrot.lane.b32.xlu0 %v247, 4
      %v406 = vpop.permute.xlu0 %405
      %407 = vrot.lane.b32.xlu0 %v248, 4
      %v408 = vpop.permute.xlu0 %407
      %409 = vrot.lane.b32.xlu0 %v249, 4
      %v410 = vpop.permute.xlu0 %409
      %411 = vrot.lane.b32.xlu0 %v250, 4
      %v412 = vpop.permute.xlu0 %411
      %445 = vrot.lane.b32.xlu0 %v251, 8
      %v446 = vpop.permute.xlu0 %445
      %447 = vrot.lane.b32.xlu0 %v252, 8
      %v448 = vpop.permute.xlu0 %447
      %449 = vrot.lane.b32.xlu0 %v253, 8
      %v450 = vpop.permute.xlu0 %449
      %451 = vrot.lane.b32.xlu0 %v254, 8
      %v452 = vpop.permute.xlu0 %451
      %453 = vrot.lane.b32.xlu0 %v255, 8
      %v454 = vpop.permute.xlu0 %453
      %455 = vrot.lane.b32.xlu0 %v256, 8
      %v456 = vpop.permute.xlu0 %455
      %457 = vrot.lane.b32.xlu0 %v257, 8
      %v458 = vpop.permute.xlu0 %457
      %459 = vrot.lane.b32.xlu0 %v258, 8
      %v460 = vpop.permute.xlu0 %459
      %461 = vrot.lane.b32.xlu0 %v259, 8
      %v462 = vpop.permute.xlu0 %461
      %463 = vrot.lane.b32.xlu0 %v260, 8
      %v464 = vpop.permute.xlu0 %463
      %465 = vrot.lane.b32.xlu0 %v261, 8
      %v466 = vpop.permute.xlu0 %465
      %467 = vrot.lane.b32.xlu0 %v262, 8
      %v468 = vpop.permute.xlu0 %467
      %469 = vrot.lane.b32.xlu0 %v263, 8
      %v470 = vpop.permute.xlu0 %469
      %471 = vrot.lane.b32.xlu0 %v264, 8
      %v472 = vpop.permute.xlu0 %471
      %473 = vrot.lane.b32.xlu0 %v265, 8
      %v474 = vpop.permute.xlu0 %473
      %475 = vrot.lane.b32.xlu0 %v266, 8
      %v476 = vpop.permute.xlu0 %475
      %509 = vrot.lane.b32.xlu0 %v268, 12
      %v510 = vpop.permute.xlu0 %509
      %511 = vrot.lane.b32.xlu0 %v269, 12
      %v512 = vpop.permute.xlu0 %511
      %513 = vrot.lane.b32.xlu0 %v270, 12
      %v514 = vpop.permute.xlu0 %513
      %515 = vrot.lane.b32.xlu0 %v271, 12
      %v516 = vpop.permute.xlu0 %515
      %517 = vrot.lane.b32.xlu0 %v272, 12
      %v518 = vpop.permute.xlu0 %517
      %519 = vrot.lane.b32.xlu0 %v273, 12
      %v520 = vpop.permute.xlu0 %519
      %521 = vrot.lane.b32.xlu0 %v274, 12
      %v522 = vpop.permute.xlu0 %521
      %523 = vrot.lane.b32.xlu0 %v275, 12
      %v524 = vpop.permute.xlu0 %523
      %525 = vrot.lane.b32.xlu0 %v276, 12
      %v526 = vpop.permute.xlu0 %525
      %527 = vrot.lane.b32.xlu0 %v277, 12
      %v528 = vpop.permute.xlu0 %527
      %529 = vrot.lane.b32.xlu0 %v278, 12
      %v530 = vpop.permute.xlu0 %529
      %531 = vrot.lane.b32.xlu0 %v279, 12
      %v532 = vpop.permute.xlu0 %531
      %533 = vrot.lane.b32.xlu0 %v280, 12
      %v534 = vpop.permute.xlu0 %533
      %535 = vrot.lane.b32.xlu0 %v281, 12
      %v536 = vpop.permute.xlu0 %535
      %537 = vrot.lane.b32.xlu0 %v282, 12
      %v538 = vpop.permute.xlu0 %537
      %539 = vrot.lane.b32.xlu0 %v283, 12
      %v540 = vpop.permute.xlu0 %539
      %573 = vrot.lane.b32.xlu0 %v284, 16
      %v574 = vpop.permute.xlu0 %573
      %575 = vrot.lane.b32.xlu0 %v285, 16
      %v576 = vpop.permute.xlu0 %575
      %577 = vrot.lane.b32.xlu0 %v286, 16
      %v578 = vpop.permute.xlu0 %577
      %579 = vrot.lane.b32.xlu0 %v287, 16
      %v580 = vpop.permute.xlu0 %579
      %581 = vrot.lane.b32.xlu0 %v288, 16
      %v582 = vpop.permute.xlu0 %581
      %583 = vrot.lane.b32.xlu0 %v289, 16
      %v584 = vpop.permute.xlu0 %583
      %585 = vrot.lane.b32.xlu0 %v290, 16
      %v586 = vpop.permute.xlu0 %585
      %587 = vrot.lane.b32.xlu0 %v291, 16
      %v588 = vpop.permute.xlu0 %587
      %589 = vrot.lane.b32.xlu0 %v292, 16
      %v590 = vpop.permute.xlu0 %589
      %591 = vrot.lane.b32.xlu0 %v293, 16
      %v592 = vpop.permute.xlu0 %591
      %593 = vrot.lane.b32.xlu0 %v294, 16
      %v594 = vpop.permute.xlu0 %593
      %595 = vrot.lane.b32.xlu0 %v295, 16
      %v596 = vpop.permute.xlu0 %595
      %597 = vrot.lane.b32.xlu0 %v296, 16
      %v598 = vpop.permute.xlu0 %597
      %599 = vrot.lane.b32.xlu0 %v297, 16
      %v600 = vpop.permute.xlu0 %599
      %601 = vrot.lane.b32.xlu0 %v298, 16
      %v602 = vpop.permute.xlu0 %601
      %603 = vrot.lane.b32.xlu0 %v299, 16
      %v604 = vpop.permute.xlu0 %603
      %637 = vrot.lane.b32.xlu0 %v300, 20
      %v638 = vpop.permute.xlu0 %637
      %639 = vrot.lane.b32.xlu0 %v301, 20
      %v640 = vpop.permute.xlu0 %639
      %641 = vrot.lane.b32.xlu0 %v302, 20
      %v642 = vpop.permute.xlu0 %641
      %643 = vrot.lane.b32.xlu0 %v303, 20
      %v644 = vpop.permute.xlu0 %643
      %645 = vrot.lane.b32.xlu0 %v304, 20
      %v646 = vpop.permute.xlu0 %645
      %647 = vrot.lane.b32.xlu0 %v305, 20
      %v648 = vpop.permute.xlu0 %647
      %649 = vrot.lane.b32.xlu0 %v306, 20
      %v650 = vpop.permute.xlu0 %649
      %651 = vrot.lane.b32.xlu0 %v307, 20
      %v652 = vpop.permute.xlu0 %651
      %653 = vrot.lane.b32.xlu0 %v308, 20
      %v654 = vpop.permute.xlu0 %653
      %655 = vrot.lane.b32.xlu0 %v309, 20
      %v656 = vpop.permute.xlu0 %655
      %657 = vrot.lane.b32.xlu0 %v310, 20
      %v658 = vpop.permute.xlu0 %657
      %659 = vrot.lane.b32.xlu0 %v311, 20
      %v660 = vpop.permute.xlu0 %659
      %661 = vrot.lane.b32.xlu0 %v312, 20
      %v662 = vpop.permute.xlu0 %661
      %663 = vrot.lane.b32.xlu0 %v313, 20
      %v664 = vpop.permute.xlu0 %663
      %665 = vrot.lane.b32.xlu0 %v314, 20
      %v666 = vpop.permute.xlu0 %665
      %667 = vrot.lane.b32.xlu0 %v315, 20
      %v668 = vpop.permute.xlu0 %667
      %701 = vrot.lane.b32.xlu0 %v317, 24
      %v702 = vpop.permute.xlu0 %701
      %703 = vrot.lane.b32.xlu0 %v318, 24
      %v704 = vpop.permute.xlu0 %703
      %705 = vrot.lane.b32.xlu0 %v319, 24
      %v706 = vpop.permute.xlu0 %705
      %707 = vrot.lane.b32.xlu0 %v320, 24
      %v708 = vpop.permute.xlu0 %707
      %709 = vrot.lane.b32.xlu0 %v321, 24
      %v710 = vpop.permute.xlu0 %709
      %711 = vrot.lane.b32.xlu0 %v322, 24
      %v712 = vpop.permute.xlu0 %711
      %713 = vrot.lane.b32.xlu0 %v323, 24
      %v714 = vpop.permute.xlu0 %713
      %715 = vrot.lane.b32.xlu0 %v324, 24
      %v716 = vpop.permute.xlu0 %715
      %717 = vrot.lane.b32.xlu0 %v325, 24
      %v718 = vpop.permute.xlu0 %717
      %719 = vrot.lane.b32.xlu0 %v326, 24
      %v720 = vpop.permute.xlu0 %719
      %721 = vrot.lane.b32.xlu0 %v327, 24
      %v722 = vpop.permute.xlu0 %721
      %723 = vrot.lane.b32.xlu0 %v328, 24
      %v724 = vpop.permute.xlu0 %723
      %725 = vrot.lane.b32.xlu0 %v329, 24
      %v726 = vpop.permute.xlu0 %725
      %727 = vrot.lane.b32.xlu0 %v330, 24
      %v728 = vpop.permute.xlu0 %727
      %729 = vrot.lane.b32.xlu0 %v331, 24
      %v730 = vpop.permute.xlu0 %729
      %731 = vrot.lane.b32.xlu0 %v332, 24
      %v732 = vpop.permute.xlu0 %731
      %765 = vrot.lane.b32.xlu0 %v333, 28
      %v766 = vpop.permute.xlu0 %765
      %767 = vrot.lane.b32.xlu0 %v334, 28
      %v768 = vpop.permute.xlu0 %767
      %769 = vrot.lane.b32.xlu0 %v335, 28
      %v770 = vpop.permute.xlu0 %769
      %771 = vrot.lane.b32.xlu0 %v336, 28
      %v772 = vpop.permute.xlu0 %771
      %773 = vrot.lane.b32.xlu0 %v337, 28
      %v774 = vpop.permute.xlu0 %773
      %775 = vrot.lane.b32.xlu0 %v338, 28
      %v776 = vpop.permute.xlu0 %775
      %777 = vrot.lane.b32.xlu0 %v339, 28
      %v778 = vpop.permute.xlu0 %777
      %779 = vrot.lane.b32.xlu0 %v340, 28
      %v780 = vpop.permute.xlu0 %779
      %781 = vrot.lane.b32.xlu0 %v341, 28
      %v782 = vpop.permute.xlu0 %781
      %783 = vrot.lane.b32.xlu0 %v342, 28
      %v784 = vpop.permute.xlu0 %783
      %785 = vrot.lane.b32.xlu0 %v343, 28
      %v786 = vpop.permute.xlu0 %785
      %787 = vrot.lane.b32.xlu0 %v344, 28
      %v788 = vpop.permute.xlu0 %787
      %789 = vrot.lane.b32.xlu0 %v345, 28
      %v790 = vpop.permute.xlu0 %789
      %791 = vrot.lane.b32.xlu0 %v346, 28
      %v792 = vpop.permute.xlu0 %791
      %793 = vrot.lane.b32.xlu0 %v347, 28
      %v794 = vpop.permute.xlu0 %793
      %795 = vrot.lane.b32.xlu0 %v348, 28
      %v796 = vpop.permute.xlu0 %795
      %829 = vrot.lane.b32.xlu0 %v349, 32
      %v830 = vpop.permute.xlu0 %829
      %831 = vrot.lane.b32.xlu0 %v350, 32
      %v832 = vpop.permute.xlu0 %831
      %833 = vrot.lane.b32.xlu0 %v351, 32
      %v834 = vpop.permute.xlu0 %833
      %835 = vrot.lane.b32.xlu0 %v352, 32
      %v836 = vpop.permute.xlu0 %835
      %837 = vrot.lane.b32.xlu0 %v353, 32
      %v838 = vpop.permute.xlu0 %837
      %839 = vrot.lane.b32.xlu0 %v354, 32
      %v840 = vpop.permute.xlu0 %839
      %841 = vrot.lane.b32.xlu0 %v355, 32
      %v842 = vpop.permute.xlu0 %841
      %843 = vrot.lane.b32.xlu0 %v356, 32
      %v844 = vpop.permute.xlu0 %843
      %845 = vrot.lane.b32.xlu0 %v357, 32
      %v846 = vpop.permute.xlu0 %845
      %847 = vrot.lane.b32.xlu0 %v358, 32
      %v848 = vpop.permute.xlu0 %847
      %849 = vrot.lane.b32.xlu0 %v359, 32
      %v850 = vpop.permute.xlu0 %849
      %851 = vrot.lane.b32.xlu0 %v360, 32
      %v852 = vpop.permute.xlu0 %851
      %853 = vrot.lane.b32.xlu0 %v361, 32
      %v854 = vpop.permute.xlu0 %853
      %855 = vrot.lane.b32.xlu0 %v362, 32
      %v856 = vpop.permute.xlu0 %855
      %857 = vrot.lane.b32.xlu0 %v363, 32
      %v858 = vpop.permute.xlu0 %857
      %859 = vrot.lane.b32.xlu0 %v364, 32
      %v860 = vpop.permute.xlu0 %859
      %vm877 = vcmask 31744
      %v878 = vsel %vm877, %v219, %v382
      %v879 = vsel %vm877, %v220, %v384
      %v880 = vsel %vm877, %v221, %v386
      %v881 = vsel %vm877, %v222, %v388
      %v882 = vsel %vm877, %v223, %v390
      %v883 = vsel %vm877, %v224, %v392
      %v884 = vsel %vm877, %v225, %v394
      %v885 = vsel %vm877, %v226, %v396
      %v886 = vsel %vm877, %v227, %v398
      %v887 = vsel %vm877, %v228, %v400
      %v888 = vsel %vm877, %v229, %v402
      %v889 = vsel %vm877, %v230, %v404
      %v890 = vsel %vm877, %v231, %v406
      %v891 = vsel %vm877, %v232, %v408
      %v892 = vsel %vm877, %v233, %v410
      %v893 = vsel %vm877, %v234, %v412
      %vm894 = vcmask 64512
      %v895 = vsel %vm894, %v878, %v446
      %v896 = vsel %vm894, %v879, %v448
      %v897 = vsel %vm894, %v880, %v450
      %v898 = vsel %vm894, %v881, %v452
      %v899 = vsel %vm894, %v882, %v454
      %v900 = vsel %vm894, %v883, %v456
      %v901 = vsel %vm894, %v884, %v458
      %v902 = vsel %vm894, %v885, %v460
      %v903 = vsel %vm894, %v886, %v462
      %v904 = vsel %vm894, %v887, %v464
      %v905 = vsel %vm894, %v888, %v466
      %v906 = vsel %vm894, %v889, %v468
      %v907 = vsel %vm894, %v890, %v470
      %v908 = vsel %vm894, %v891, %v472
      %v909 = vsel %vm894, %v892, %v474
      %v910 = vsel %vm894, %v893, %v476
      %vm911 = vcmask 97280
      %v912 = vsel %vm911, %v895, %v510
      %v913 = vsel %vm911, %v896, %v512
      %v914 = vsel %vm911, %v897, %v514
      %v915 = vsel %vm911, %v898, %v516
      %v916 = vsel %vm911, %v899, %v518
      %v917 = vsel %vm911, %v900, %v520
      %v918 = vsel %vm911, %v901, %v522
      %v919 = vsel %vm911, %v902, %v524
      %v920 = vsel %vm911, %v903, %v526
      %v921 = vsel %vm911, %v904, %v528
      %v922 = vsel %vm911, %v905, %v530
      %v923 = vsel %vm911, %v906, %v532
      %v924 = vsel %vm911, %v907, %v534
      %v925 = vsel %vm911, %v908, %v536
      %v926 = vsel %vm911, %v909, %v538
      %v927 = vsel %vm911, %v910, %v540
      %vm928 = vcmask 130048
      %v929 = vsel %vm928, %v912, %v574
      %v930 = vsel %vm928, %v913, %v576
      %v931 = vsel %vm928, %v914, %v578
      %v932 = vsel %vm928, %v915, %v580
      %v933 = vsel %vm928, %v916, %v582
      %v934 = vsel %vm928, %v917, %v584
      %v935 = vsel %vm928, %v918, %v586
      %v936 = vsel %vm928, %v919, %v588
      %v937 = vsel %vm928, %v920, %v590
      %v938 = vsel %vm928, %v921, %v592
      %v939 = vsel %vm928, %v922, %v594
      %v940 = vsel %vm928, %v923, %v596
      %v941 = vsel %vm928, %v924, %v598
      %v942 = vsel %vm928, %v925, %v600
      %v943 = vsel %vm928, %v926, %v602
      %v944 = vsel %vm928, %v927, %v604
      %vm945 = vcmask 162816
      %v946 = vsel %vm945, %v929, %v638
      %v947 = vsel %vm945, %v930, %v640
      %v948 = vsel %vm945, %v931, %v642
      %v949 = vsel %vm945, %v932, %v644
      %v950 = vsel %vm945, %v933, %v646
      %v951 = vsel %vm945, %v934, %v648
      %v952 = vsel %vm945, %v935, %v650
      %v953 = vsel %vm945, %v936, %v652
      %v954 = vsel %vm945, %v937, %v654
      %v955 = vsel %vm945, %v938, %v656
      %v956 = vsel %vm945, %v939, %v658
      %v957 = vsel %vm945, %v940, %v660
      %v958 = vsel %vm945, %v941, %v662
      %v959 = vsel %vm945, %v942, %v664
      %v960 = vsel %vm945, %v943, %v666
      %v961 = vsel %vm945, %v944, %v668
      %vm962 = vcmask 195584
      %v963 = vsel %vm962, %v946, %v702
      %v964 = vsel %vm962, %v947, %v704
      %v965 = vsel %vm962, %v948, %v706
      %v966 = vsel %vm962, %v949, %v708
      %v967 = vsel %vm962, %v950, %v710
      %v968 = vsel %vm962, %v951, %v712
      %v969 = vsel %vm962, %v952, %v714
      %v970 = vsel %vm962, %v953, %v716
      %v971 = vsel %vm962, %v954, %v718
      %v972 = vsel %vm962, %v955, %v720
      %v973 = vsel %vm962, %v956, %v722
      %v974 = vsel %vm962, %v957, %v724
      %v975 = vsel %vm962, %v958, %v726
      %v976 = vsel %vm962, %v959, %v728
      %v977 = vsel %vm962, %v960, %v730
      %v978 = vsel %vm962, %v961, %v732
      %vm979 = vcmask 228352
      %v980 = vsel %vm979, %v963, %v766
      %v981 = vsel %vm979, %v964, %v768
      %v982 = vsel %vm979, %v965, %v770
      %v983 = vsel %vm979, %v966, %v772
      %v984 = vsel %vm979, %v967, %v774
      %v985 = vsel %vm979, %v968, %v776
      %v986 = vsel %vm979, %v969, %v778
      %v987 = vsel %vm979, %v970, %v780
      %v988 = vsel %vm979, %v971, %v782
      %v989 = vsel %vm979, %v972, %v784
      %v990 = vsel %vm979, %v973, %v786
      %v991 = vsel %vm979, %v974, %v788
      %v992 = vsel %vm979, %v975, %v790
      %v993 = vsel %vm979, %v976, %v792
      %v994 = vsel %vm979, %v977, %v794
      %v995 = vsel %vm979, %v978, %v796
      %vm996 = vcmask 261120
      %v997 = vsel %vm996, %v980, %v830
      %v998 = vsel %vm996, %v981, %v832
      %v999 = vsel %vm996, %v982, %v834
      %v1000 = vsel %vm996, %v983, %v836
      %v1001 = vsel %vm996, %v984, %v838
      %v1002 = vsel %vm996, %v985, %v840
      %v1003 = vsel %vm996, %v986, %v842
      %v1004 = vsel %vm996, %v987, %v844
      %v1005 = vsel %vm996, %v988, %v846
      %v1006 = vsel %vm996, %v989, %v848
      %v1007 = vsel %vm996, %v990, %v850
      %v1008 = vsel %vm996, %v991, %v852
      %v1009 = vsel %vm996, %v992, %v854
      %v1010 = vsel %vm996, %v993, %v856
      %v1011 = vsel %vm996, %v994, %v858
      %v1012 = vsel %vm996, %v995, %v860
      %v1013 = vld [vmem:[%s1] sm:$0xff]
      %v1014 = vld [vmem:[%s1 + $0x8] sm:$0xff]
      %v1015 = vld [vmem:[%s1 + $0x10] sm:$0xff]
      %v1016 = vld [vmem:[%s1 + $0x18] sm:$0xff]
      %v1017 = vld [vmem:[%s1 + $0x20] sm:$0xf]
      %vm1018 = vcmask 293888
      %v1020 = vsel %vm1018, %v997, 0
      %v1023 = vsel %vm1018, %v998, 0
      %v1026 = vsel %vm1018, %v999, 0
      %v1029 = vsel %vm1018, %v1000, 0
      %v1032 = vsel %vm1018, %v1001, 0
      %v1035 = vsel %vm1018, %v1002, 0
      %v1038 = vsel %vm1018, %v1003, 0
      %v1041 = vsel %vm1018, %v1004, 0
      %v1044 = vsel %vm1018, %v1005, 0
      %v1047 = vsel %vm1018, %v1006, 0
      %v1050 = vsel %vm1018, %v1007, 0
      %v1053 = vsel %vm1018, %v1008, 0
      %v1056 = vsel %vm1018, %v1009, 0
      %v1059 = vsel %vm1018, %v1010, 0
      %v1062 = vsel %vm1018, %v1011, 0
      %v1065 = vsel %vm1018, %v1012, 0
      %vm1067 = vcmask 1043456
      %v1069 = vsel %vm1067, %v1017, 0
      %1071 = vmatpush.msra.mxu0 0.0
      %1072 = vmatpush.msra.mxu0 0.0
      %1073 = vmatpush.msra.mxu0 0.0
      %1074 = vmatpush.msra.mxu0 0.0
      %1075 = vmatpush.msra.mxu0 0.0
      %1076 = vmatpush.msra.mxu0 0.0
      %1077 = vmatpush.msra.mxu0 0.0
      %1078 = vmatpush.msra.mxu0 0.0
      %1079 = vmatpush.msra.mxu0 0.0
      %1080 = vmatpush.msra.mxu0 0.0
      %1081 = vmatpush.msra.mxu0 0.0
      %1082 = vmatpush.msra.mxu0 %v1069
      %1083 = vmatpush.msra.mxu0 %v1016
      %1084 = vmatpush.msra.mxu0 %v1015
      %1085 = vmatpush.msra.mxu0 %v1014
      %1086 = vmatpush.msra.mxu0 %v1013
      %1087 = vmatmul.f32.gmra.mxu0 %v1020
      %v1088 = vpop.f32.mrf.mxu0
      %v1089 = vadd.f32 0.0, %v1088
      %1090 = vmatmul.f32.gmra.mxu0 %v1023
      %v1091 = vpop.f32.mrf.mxu0
      %v1092 = vadd.f32 0.0, %v1091
      %1093 = vmatmul.f32.gmra.mxu0 %v1026
      %v1094 = vpop.f32.mrf.mxu0
      %v1095 = vadd.f32 0.0, %v1094
      %1096 = vmatmul.f32.gmra.mxu0 %v1029
      %v1097 = vpop.f32.mrf.mxu0
      %v1098 = vadd.f32 0.0, %v1097
      %1099 = vmatmul.f32.gmra.mxu0 %v1032
      %v1100 = vpop.f32.mrf.mxu0
      %v1101 = vadd.f32 0.0, %v1100
      %1102 = vmatmul.f32.gmra.mxu0 %v1035
      %v1103 = vpop.f32.mrf.mxu0
      %v1104 = vadd.f32 0.0, %v1103
      %1105 = vmatmul.f32.gmra.mxu0 %v1038
      %v1106 = vpop.f32.mrf.mxu0
      %v1107 = vadd.f32 0.0, %v1106
      %1108 = vmatmul.f32.gmra.mxu0 %v1041
      %v1109 = vpop.f32.mrf.mxu0
      %v1110 = vadd.f32 0.0, %v1109
      %1111 = vmatmul.f32.gmra.mxu0 %v1044
      %v1112 = vpop.f32.mrf.mxu0
      %v1113 = vadd.f32 0.0, %v1112
      %1114 = vmatmul.f32.gmra.mxu0 %v1047
      %v1115 = vpop.f32.mrf.mxu0
      %v1116 = vadd.f32 0.0, %v1115
      %1117 = vmatmul.f32.gmra.mxu0 %v1050
      %v1118 = vpop.f32.mrf.mxu0
      %v1119 = vadd.f32 0.0, %v1118
      %1120 = vmatmul.f32.gmra.mxu0 %v1053
      %v1121 = vpop.f32.mrf.mxu0
      %v1122 = vadd.f32 0.0, %v1121
      %1123 = vmatmul.f32.gmra.mxu0 %v1056
      %v1124 = vpop.f32.mrf.mxu0
      %v1125 = vadd.f32 0.0, %v1124
      %1126 = vmatmul.f32.gmra.mxu0 %v1059
      %v1127 = vpop.f32.mrf.mxu0
      %v1128 = vadd.f32 0.0, %v1127
      %1129 = vmatmul.f32.gmra.mxu0 %v1062
      %v1130 = vpop.f32.mrf.mxu0
      %v1131 = vadd.f32 0.0, %v1130
      %1132 = vmatmul.f32.gmra.mxu0 %v1065
      %v1133 = vpop.f32.mrf.mxu0
      %v1134 = vadd.f32 0.0, %v1133
      %1135 = vdwg.mxu0
      %1136 = vst [vmem:[%s211] sm:$0xff] %v1089
      %1137 = vst [vmem:[%s211 + $0x8] sm:$0xff] %v1092
      %1138 = vst [vmem:[%s211 + $0x10] sm:$0xff] %v1095
      %1139 = vst [vmem:[%s211 + $0x18] sm:$0xff] %v1098
      %1140 = vst [vmem:[%s211 + $0x20] sm:$0xff] %v1101
      %1141 = vst [vmem:[%s211 + $0x28] sm:$0xff] %v1104
      %1142 = vst [vmem:[%s211 + $0x30] sm:$0xff] %v1107
      %1143 = vst [vmem:[%s211 + $0x38] sm:$0xff] %v1110
      %1144 = vst [vmem:[%s211 + $0x40] sm:$0xff] %v1113
      %1145 = vst [vmem:[%s211 + $0x48] sm:$0xff] %v1116
      %1146 = vst [vmem:[%s211 + $0x50] sm:$0xff] %v1119
      %1147 = vst [vmem:[%s211 + $0x58] sm:$0xff] %v1122
      %1148 = vst [vmem:[%s211 + $0x60] sm:$0xff] %v1125
      %1149 = vst [vmem:[%s211 + $0x68] sm:$0xff] %v1128
      %1150 = vst [vmem:[%s211 + $0x70] sm:$0xff] %v1131
      %1151 = vst [vmem:[%s211 + $0x78] sm:$0xff] %v1134
      %v1152 = vadd.f32 %v1089, %v1092
      %v1153 = vadd.f32 %v1152, %v1095
      %v1154 = vadd.f32 %v1153, %v1098
      %v1155 = vadd.f32 %v1154, %v1101
      %v1156 = vadd.f32 %v1155, %v1104
      %v1157 = vadd.f32 %v1156, %v1107
      %v1158 = vadd.f32 %v1157, %v1110
      %v1159 = vadd.f32 %v1158, %v1113
      %v1160 = vadd.f32 %v1159, %v1116
      %v1161 = vadd.f32 %v1160, %v1119
      %v1162 = vadd.f32 %v1161, %v1122
      %v1163 = vadd.f32 %v1162, %v1125
      %v1164 = vadd.f32 %v1163, %v1128
      %v1165 = vadd.f32 %v1164, %v1131
      %v1166 = vadd.f32 %v1165, %v1134
      %v1167 = vrot.slane %v1166, 4
      %v1168 = vadd.f32 %v1166, %v1167
      %v1169 = vrot.slane %v1168, 2
      %v1170 = vadd.f32 %v1168, %v1169
      %v1171 = vrot.slane %v1170, 1
      %v1172 = vadd.f32 %v1170, %v1171
      %v1173 = vmul.f32 %v1089, %v1089
      %v1174 = vmul.f32 %v1092, %v1092
      %v1175 = vmul.f32 %v1095, %v1095
      %v1176 = vmul.f32 %v1098, %v1098
      %v1177 = vmul.f32 %v1101, %v1101
      %v1178 = vmul.f32 %v1104, %v1104
      %v1179 = vmul.f32 %v1107, %v1107
      %v1180 = vmul.f32 %v1110, %v1110
      %v1181 = vmul.f32 %v1113, %v1113
      %v1182 = vmul.f32 %v1116, %v1116
      %v1183 = vmul.f32 %v1119, %v1119
      %v1184 = vmul.f32 %v1122, %v1122
      %v1185 = vmul.f32 %v1125, %v1125
      %v1186 = vmul.f32 %v1128, %v1128
      %v1187 = vmul.f32 %v1131, %v1131
      %v1188 = vmul.f32 %v1134, %v1134
      %v1189 = vadd.f32 %v1173, %v1174
      %v1190 = vadd.f32 %v1189, %v1175
      %v1191 = vadd.f32 %v1190, %v1176
      %v1192 = vadd.f32 %v1191, %v1177
      %v1193 = vadd.f32 %v1192, %v1178
      %v1194 = vadd.f32 %v1193, %v1179
      %v1195 = vadd.f32 %v1194, %v1180
      %v1196 = vadd.f32 %v1195, %v1181
      %v1197 = vadd.f32 %v1196, %v1182
      %v1198 = vadd.f32 %v1197, %v1183
      %v1199 = vadd.f32 %v1198, %v1184
      %v1200 = vadd.f32 %v1199, %v1185
      %v1201 = vadd.f32 %v1200, %v1186
      %v1202 = vadd.f32 %v1201, %v1187
      %v1203 = vadd.f32 %v1202, %v1188
      %v1204 = vrot.slane %v1203, 4
      %v1205 = vadd.f32 %v1203, %v1204
      %v1206 = vrot.slane %v1205, 2
      %v1207 = vadd.f32 %v1205, %v1206
      %v1208 = vrot.slane %v1207, 1
      %v1209 = vadd.f32 %v1207, %v1208
      %vm1210 = vcmask 1040384
      %v1211 = vsel %vm1210, %v1172, %v1209
      %p1212 = scmp.eq.s32.totalorder %s20, 0
      // Predicated region
      $region29: #{basic_conv2d.2} parent=27 // pred_check
        %p1213 = pneg %p1212
      $region30: #{basic_conv2d.2} parent=27 // pred_check_branch
        %1215 = sbr.rel (%p1213) target = $region32
      $region31: #{basic_conv2d.2} parent=27 // pred_region
        %1216 = vst [vmem:[%s218] sm:$0x3] 0.0
      $region32: #{basic_conv2d.2} parent=27 // pred_fallthru
        _
      %v1217 = vld [vmem:[%s218] sm:$0x3]
      %v1218 = vadd.f32 %v1217, %v1211
      %1219 = vst [vmem:[%s218] sm:$0x3] %v1218
      %s1220 = smul.u32 %s19, 2
      %s1221 = sadd.s32 %s1220, %s20
      %s1222 = smul.u32 16, %s1221
      %p1223 = scmp.lt.s32.totalorder %s1222, 63
      %s1224 = scalar_select %p1223, %s1222, 63
      %s1225 = smul.addr %s1224, 8
      %s1226 = scalar_lea.vmem %s2, %s1225
      %p1227 = scmp.lt.s32.totalorder %s19, 1
      %s1228 = scalar_select %p1227, %s19, 1
      %s1229 = smul.addr %s1228, 2
      %s1230 = scalar_lea.vmem %s3, %s1229
      // Predicated region
      $region33: #{basic_conv2d.2} parent=27 // pred_check
        %p1231 = pneg %p98
      $region34: #{basic_conv2d.2} parent=27 // pred_check_branch
        %1233 = sbr.rel (%p1231) target = $region36
      $region35: #{basic_conv2d.2} parent=27 // pred_region
        %s1234 = smul.u32 %s19, 2
        %s1235 = sadd.s32 %s1234, %s20
        %s1236 = smul.u32 16, %s1235
      $region36: #{basic_conv2d.2} parent=27 // pred_fallthru
        _
      // Predicated region
      $region37: #{basic_conv2d.2} parent=27 // pred_check
        %p1237 = pneg %p124
      $region38: #{basic_conv2d.2} parent=27 // pred_check_branch
        %1239 = sbr.rel (%p1237) target = $region40
      $region39: #{basic_conv2d.2} parent=27 // pred_region
        _
      $region40: #{basic_conv2d.2} parent=27 // pred_fallthru
        _
    $region28: #{basic_conv2d.2} parent=5 // pred_fallthru
      _
    %p1240 = scmp.le.s32.totalorder 2, %s10
    // Predicated region
    $region41: #{basic_conv2d.2} parent=5 // pred_check
      %p1241 = pneg %p1240
    $region42: #{basic_conv2d.2} parent=5 // pred_check_branch
      %1243 = sbr.rel (%p1241) target = $region44
    $region43: #{basic_conv2d.2} parent=5 // pred_region
      %s1244 = ssub.s32 %s10, 2
      // Predicated region
      $region45: #{basic_conv2d.2} parent=43 // pred_check
        %p1245 = pneg %p104
      $region46: #{basic_conv2d.2} parent=43 // pred_check_branch
        %1247 = sbr.rel (%p1245) target = $region48
      $region47: #{basic_conv2d.2} parent=43 // pred_region
        %s1248 = smul.u32 %s21, 2
        %s1249 = sadd.s32 %s1248, %s22
        %s1250 = smul.u32 16, %s1249
        %p1251 = scmp.lt.s32.totalorder %s1250, 63
        %s1252 = scalar_select %p1251, %s1250, 63
        %s1253 = smul.addr %s1252, 8
        %s1254 = scalar_lea.vmem %s2, %s1253
      $region48: #{basic_conv2d.2} parent=43 // pred_fallthru
        _
      // Predicated region
      $region49: #{basic_conv2d.2} parent=43 // pred_check
        %p1255 = pneg %p130
      $region50: #{basic_conv2d.2} parent=43 // pred_check_branch
        %1257 = sbr.rel (%p1255) target = $region52
      $region51: #{basic_conv2d.2} parent=43 // pred_region
        %p1258 = scmp.lt.s32.totalorder %s21, 1
        %s1259 = scalar_select %p1258, %s21, 1
        %s1260 = smul.addr %s1259, 2
        %s1261 = scalar_lea.vmem %s3, %s1260
      $region52: #{basic_conv2d.2} parent=43 // pred_fallthru
        _
    $region44: #{basic_conv2d.2} parent=5 // pred_fallthru
      _
  $region6: #{basic_conv2d.2} parent=0 // loop_footer
    %s14 = sadd.s32 1, %s10
  $region7: #{basic_conv2d.2} parent=0 // loop_footer_branch
    %9 = sbr.rel target = $region3
  $region8: #{basic_conv2d.2} parent=0 // loop_exit
    _

</llo_original>
